<compile_context>
chip_gen: v7x
topology: tpu7x:2x2x1
jax: 0.10.0
libtpu: 0.0.40
codegen_flags: <defaults>
</compile_context>

<pallas_src>
import math
import functools

import jax
import jax.numpy as jnp
from jax import lax
from jax.experimental import pallas as pl
from jax.experimental.pallas import tpu as pltpu


# Contract x's last dim against W's last dim: y = x @ W.T without materializing
# the transpose (folded into the MXU matmul instead of an XLU relayout).
_CONTRACT_LAST = (((1,), (1,)), ((), ()))


def mha_kernel(x_ref, wq_ref, wk_ref, wv_ref, wo_ref,
               bq_ref, bk_ref, bv_ref, bo_ref,
               o_ref,
               k_scratch, v_scratch,
               *, num_heads, head_dim, seq_len, q_tile, compute_dtype):
    """One grid step handles one (batch, query-tile) pair."""
    H, Dh, L, TQ = num_heads, head_dim, seq_len, q_tile
    D = H * Dh
    qt = pl.program_id(1)

    # K/V projections depend on the whole sequence; compute, head-split and
    # cast them ONCE per batch element (first query tile) into persistent
    # compute-dtype VMEM scratch, reused by every query tile of this batch.
    @pl.when(qt == 0)
    def _():
        xb = x_ref[0]                                              # (L, D) compute dtype
        k = lax.dot_general(xb, wk_ref[...], _CONTRACT_LAST,
                            preferred_element_type=jnp.float32) + bk_ref[0]
        v = lax.dot_general(xb, wv_ref[...], _CONTRACT_LAST,
                            preferred_element_type=jnp.float32) + bv_ref[0]
        # (L, D) -> (H, L, Dh): matches PyTorch view + transpose(1, 2).
        k_scratch[...] = k.reshape(L, H, Dh).transpose(1, 0, 2).astype(compute_dtype)
        v_scratch[...] = v.reshape(L, H, Dh).transpose(1, 0, 2).astype(compute_dtype)

    # Q projection for this query tile only; fold the 1/sqrt(Dh) scale into Q.
    q_start = pl.multiple_of(qt * TQ, TQ)
    xq = x_ref[0, pl.ds(q_start, TQ), :]                           # (TQ, D)
    q = lax.dot_general(xq, wq_ref[...], _CONTRACT_LAST,
                        preferred_element_type=jnp.float32) + bq_ref[0]
    q = q * (1.0 / math.sqrt(Dh))
    qh = q.reshape(TQ, H, Dh).transpose(1, 0, 2).astype(compute_dtype)  # (H, TQ, Dh)

    # Batched scores over heads; K "transpose" folded into the contraction.
    scores = jnp.einsum("hqd,hkd->hqk", qh, k_scratch[...],
                        preferred_element_type=jnp.float32)        # (H, TQ, L) f32

    # Numerically-stable softmax in f32.  The normalization is applied AFTER
    # the PV matmul (H*TQ*Dh multiplies instead of H*TQ*L).
    scores = scores - jnp.max(scores, axis=-1, keepdims=True)
    p = jnp.exp(scores)
    denom = jnp.sum(p, axis=-1, keepdims=True)                     # (H, TQ, 1)

    attn = jnp.einsum("hqk,hkd->hqd", p.astype(compute_dtype), v_scratch[...],
                      preferred_element_type=jnp.float32)          # (H, TQ, Dh) f32
    attn = attn * pl.reciprocal(denom, approx=True)

    # Head concat (single lane-dense (TQ, D) relayout) + output projection as
    # one full-depth MXU matmul.
    attn = attn.transpose(1, 0, 2).reshape(TQ, D)
    out = lax.dot_general(attn.astype(compute_dtype), wo_ref[...], _CONTRACT_LAST,
                          preferred_element_type=jnp.float32) + bo_ref[0]
    o_ref[0] = out.astype(o_ref.dtype)


def _pick_q_tile(L, q_tile, num_heads, vmem_cap):
    """Largest multiple-of-8 divisor of L <= q_tile; shrink if scores won't fit."""
    if L % 8 != 0 or L <= q_tile:
        # TODO(synk): pad/mask a ragged tail tile instead of one big tile.
        TQ = L
    else:
        TQ = L
        for t in range(q_tile - (q_tile % 8), 7, -8):
            if L % t == 0:
                TQ = t
                break
    # Shrink TQ while the f32 score temporaries would dominate the VMEM budget.
    while TQ % 16 == 0 and 3 * num_heads * TQ * L * 4 > vmem_cap // 2:
        TQ //= 2
    return TQ


def multi_head_attention(x, params, num_heads, *, q_tile=None,
                         compute_dtype=jnp.bfloat16):
    """x: (B, L, D).  params: W_q/W_k/W_v/W_o (D, D) and b_* (D,).

    compute_dtype=jnp.bfloat16 (default) feeds the MXU bf16 inputs with f32
    accumulation; pass jnp.float32 when strict f32 parity is required.
    """
    B, L, D = x.shape
    assert D % num_heads == 0, "embed_dim must be divisible by num_heads"
    head_dim = D // num_heads

    # Per-chip VMEM budget (v5e/v6e: 128 MiB physical, v7x: 64 MiB); keep
    # headroom for compiler-internal scratch rather than claiming all of it.
    try:
        phys = int(getattr(pltpu.get_tpu_info(), "vmem_capacity_bytes",
                           64 * 1024 * 1024))
    except Exception:  # conservative fallback (e.g. interpret mode)
        phys = 64 * 1024 * 1024
    vmem_cap = (phys * 7) // 8

    if q_tile is None:
        q_tile = 256 if phys > 96 * 1024 * 1024 else 128
    TQ = _pick_q_tile(L, q_tile, num_heads, vmem_cap)
    num_q_tiles = L // TQ

    # Inputs / weights cast once in the wrapper (cheap, amortized over the grid).
    x_c = x.astype(compute_dtype)
    wq = params["W_q"].astype(compute_dtype)
    wk = params["W_k"].astype(compute_dtype)
    wv = params["W_v"].astype(compute_dtype)
    wo = params["W_o"].astype(compute_dtype)
    # Biases stay f32 (added post f32 accumulation), shaped (1, D) for TPU layout.
    bq = params["b_q"].reshape(1, D).astype(jnp.float32)
    bk = params["b_k"].reshape(1, D).astype(jnp.float32)
    bv = params["b_v"].reshape(1, D).astype(jnp.float32)
    bo = params["b_o"].reshape(1, D).astype(jnp.float32)

    weight_spec = pl.BlockSpec((D, D), lambda b, qt: (0, 0))
    bias_spec = pl.BlockSpec((1, D), lambda b, qt: (0, 0))

    # VMEM accounting (double-buffered operands + scratch + f32 temporaries).
    bpe_c = jnp.dtype(compute_dtype).itemsize
    bpe_x = jnp.dtype(x.dtype).itemsize
    weight_bytes = 4 * D * D * bpe_c * 2
    bias_bytes = 4 * D * 4 * 2
    x_bytes = L * D * bpe_c * 2
    out_bytes = TQ * D * bpe_x * 2
    scratch_bytes = 2 * num_heads * L * head_dim * bpe_c
    score_bytes = 2 * num_heads * TQ * L * 4
    tmp_bytes = (2 * L * D + 3 * TQ * D) * 4
    need = (weight_bytes + bias_bytes + x_bytes + out_bytes
            + scratch_bytes + score_bytes + tmp_bytes)
    vmem_limit = int(min(vmem_cap, max(32 * 1024 * 1024, 2 * need)))

    # Advisory cost estimate so XLA can schedule/overlap surrounding ops.
    flops = 8 * B * L * D * D + 4 * B * num_heads * L * L * head_dim
    transcendentals = B * num_heads * L * L
    bytes_accessed = (4 * D * D * bpe_c + 2 * B * L * D * bpe_x + 8 * D * 4)
    cost = pl.CostEstimate(flops=int(flops),
                           transcendentals=int(transcendentals),
                           bytes_accessed=int(bytes_accessed))

    kernel = functools.partial(
        mha_kernel, num_heads=num_heads, head_dim=head_dim,
        seq_len=L, q_tile=TQ, compute_dtype=compute_dtype)

    return pl.pallas_call(
        kernel,
        out_shape=jax.ShapeDtypeStruct((B, L, D), x.dtype),
        grid_spec=pltpu.PrefetchScalarGridSpec(
            num_scalar_prefetch=0,
            grid=(B, num_q_tiles),
            in_specs=[
                pl.BlockSpec((1, L, D), lambda b, qt: (b, 0, 0)),    # x (full seq, per batch)
                weight_spec, weight_spec, weight_spec, weight_spec,  # W_q W_k W_v W_o
                bias_spec, bias_spec, bias_spec, bias_spec,          # b_q b_k b_v b_o
            ],
            out_specs=pl.BlockSpec((1, TQ, D), lambda b, qt: (b, qt, 0)),
            scratch_shapes=[pltpu.VMEM((num_heads, L, head_dim), compute_dtype),  # K (head-split)
                            pltpu.VMEM((num_heads, L, head_dim), compute_dtype)], # V (head-split)
        ),
        compiler_params=pltpu.CompilerParams(
            # Batch axis parallel (megacore); query-tile axis arbitrary because
            # K/V scratch is carried across query tiles of the same batch element.
            dimension_semantics=("parallel", "arbitrary"),
            vmem_limit_bytes=vmem_limit,
        ),
        cost_estimate=cost,
    )(x_c, wq, wk, wv, wo, bq, bk, bv, bo)


def reference_mha(x, params, num_heads):
    """Plain-JAX reference matching the PyTorch module semantics (f32)."""
    B, L, D = x.shape
    Dh = D // num_heads
    q = x @ params["W_q"].T + params["b_q"]
    k = x @ params["W_k"].T + params["b_k"]
    v = x @ params["W_v"].T + params["b_v"]

    def split(t):  # (B, L, D) -> (B, H, L, Dh)
        return t.reshape(B, L, num_heads, Dh).transpose(0, 2, 1, 3)

    q, k, v = split(q), split(k), split(v)
    scores = jnp.einsum("bhqd,bhkd->bhqk", q, k) / math.sqrt(Dh)
    w = jax.nn.softmax(scores, axis=-1)
    o = jnp.einsum("bhqk,bhkd->bhqd", w, v)
    o = o.transpose(0, 2, 1, 3).reshape(B, L, D)
    return o @ params["W_o"].T + params["b_o"]


if __name__ == "__main__":
    # Small shapes; q_tile=8 forces two query tiles so the per-batch K/V
    # scratch carry across the "arbitrary" grid axis is exercised.
    B, L, D, H = 2, 16, 32, 4

    key = jax.random.PRNGKey(0)
    keys = jax.random.split(key, 9)
    bound = 1.0 / math.sqrt(D)  # PyTorch nn.Linear default init range
    params = {
        "W_q": jax.random.uniform(keys[0], (D, D), jnp.float32, -bound, bound),
        "W_k": jax.random.uniform(keys[1], (D, D), jnp.float32, -bound, bound),
        "W_v": jax.random.uniform(keys[2], (D, D), jnp.float32, -bound, bound),
        "W_o": jax.random.uniform(keys[3], (D, D), jnp.float32, -bound, bound),
        "b_q": jax.random.uniform(keys[4], (D,), jnp.float32, -bound, bound),
        "b_k": jax.random.uniform(keys[5], (D,), jnp.float32, -bound, bound),
        "b_v": jax.random.uniform(keys[6], (D,), jnp.float32, -bound, bound),
        "b_o": jax.random.uniform(keys[7], (D,), jnp.float32, -bound, bound),
    }
    x = jax.random.normal(keys[8], (B, L, D), jnp.float32)

    out = multi_head_attention(x, params, H, q_tile=8)   # default bf16 compute
    out = jax.block_until_ready(out)

    ref = reference_mha(x, params, H)
    assert out.shape == (B, L, D)
    # Tolerance accounts for bf16 MXU inputs (f32 accumulation) and the EUP
    # approximate reciprocal in the softmax denominator.
    max_err = float(jnp.max(jnp.abs(out - ref)))
    assert max_err < 5e-2, f"mismatch vs reference: max_err={max_err}"
    print("KERNEL_OK")
</pallas_src>

<mosaic_0001>
module attributes {stable_mosaic.version = 11 : i64} {
  func.func @mha_kernel(%arg0: i32, %arg1: i32, %arg2: memref<1x16x32xbf16, #tpu.memory_space<vmem>>, %arg3: memref<32x32xbf16, #tpu.memory_space<vmem>>, %arg4: memref<32x32xbf16, #tpu.memory_space<vmem>>, %arg5: memref<32x32xbf16, #tpu.memory_space<vmem>>, %arg6: memref<32x32xbf16, #tpu.memory_space<vmem>>, %arg7: memref<1x32xf32, #tpu.memory_space<vmem>>, %arg8: memref<1x32xf32, #tpu.memory_space<vmem>>, %arg9: memref<1x32xf32, #tpu.memory_space<vmem>>, %arg10: memref<1x32xf32, #tpu.memory_space<vmem>>, %arg11: memref<1x8x32xf32, #tpu.memory_space<vmem>>, %arg12: memref<4x16x8xbf16, #tpu.memory_space<vmem>>, %arg13: memref<4x16x8xbf16, #tpu.memory_space<vmem>>) attributes {dimension_semantics = [#tpu.dimension_semantics<parallel>, #tpu.dimension_semantics<arbitrary>], iteration_bounds = array<i64: 2, 2>, scalar_prefetch = 0 : i64, scratch_operands = 2 : i64, tpu.core_type = #tpu.core_type<tc>, window_params = [{transform_indices = @transform_0, window_bounds = array<i64: 1, 16, 32>}, {pipeline_mode = #tpu.pipeline_mode<synchronous>, transform_indices = @transform_1, window_bounds = array<i64: 32, 32>}, {pipeline_mode = #tpu.pipeline_mode<synchronous>, transform_indices = @transform_2, window_bounds = array<i64: 32, 32>}, {pipeline_mode = #tpu.pipeline_mode<synchronous>, transform_indices = @transform_3, window_bounds = array<i64: 32, 32>}, {pipeline_mode = #tpu.pipeline_mode<synchronous>, transform_indices = @transform_4, window_bounds = array<i64: 32, 32>}, {pipeline_mode = #tpu.pipeline_mode<synchronous>, transform_indices = @transform_5, window_bounds = array<i64: 1, 32>}, {pipeline_mode = #tpu.pipeline_mode<synchronous>, transform_indices = @transform_6, window_bounds = array<i64: 1, 32>}, {pipeline_mode = #tpu.pipeline_mode<synchronous>, transform_indices = @transform_7, window_bounds = array<i64: 1, 32>}, {pipeline_mode = #tpu.pipeline_mode<synchronous>, transform_indices = @transform_8, window_bounds = array<i64: 1, 32>}, {transform_indices = @transform_9, window_bounds = array<i64: 1, 8, 32>}]} {
    %c0_i32 = arith.constant 0 : i32
    %0 = arith.cmpi eq, %arg1, %c0_i32 : i32
    %1 = arith.extui %0 : i1 to i32
    %c0_i32_0 = arith.constant 0 : i32
    %2 = arith.cmpi ne, %1, %c0_i32_0 : i32
    scf.if %2 {
      %c0_25 = arith.constant 0 : index
      %c0_26 = arith.constant 0 : index
      %c0_27 = arith.constant 0 : index
      %48 = vector.load %arg2[%c0_25, %c0_26, %c0_27] : memref<1x16x32xbf16, #tpu.memory_space<vmem>>, vector<1x16x32xbf16>
      %49 = vector.shape_cast %48 : vector<1x16x32xbf16> to vector<16x32xbf16>
      %c0_28 = arith.constant 0 : index
      %c0_29 = arith.constant 0 : index
      %50 = vector.load %arg4[%c0_28, %c0_29] : memref<32x32xbf16, #tpu.memory_space<vmem>>, vector<32x32xbf16>
      %cst_30 = arith.constant dense<0.000000e+00> : vector<16x32xf32>
      %51 = tpu.matmul %49, %50, %cst_30 {dimension_numbers = #tpu.dot_dimension_numbers<[1], [1], [0], [0], [0, 0, 1, 0], [], []>} : vector<16x32xbf16>, vector<32x32xbf16>, vector<16x32xf32> -> vector<16x32xf32>
      %c0_31 = arith.constant 0 : index
      %c0_32 = arith.constant 0 : index
      %52 = vector.load %arg8[%c0_31, %c0_32] : memref<1x32xf32, #tpu.memory_space<vmem>>, vector<1x32xf32>
      %53 = vector.shape_cast %52 : vector<1x32xf32> to vector<32xf32>
      %54 = vector.shape_cast %53 : vector<32xf32> to vector<1x32xf32>
      %55 = vector.broadcast %54 : vector<1x32xf32> to vector<16x32xf32>
      %56 = arith.addf %51, %55 : vector<16x32xf32>
      %c0_33 = arith.constant 0 : index
      %c0_34 = arith.constant 0 : index
      %57 = vector.load %arg5[%c0_33, %c0_34] : memref<32x32xbf16, #tpu.memory_space<vmem>>, vector<32x32xbf16>
      %cst_35 = arith.constant dense<0.000000e+00> : vector<16x32xf32>
      %58 = tpu.matmul %49, %57, %cst_35 {dimension_numbers = #tpu.dot_dimension_numbers<[1], [1], [0], [0], [0, 0, 1, 0], [], []>} : vector<16x32xbf16>, vector<32x32xbf16>, vector<16x32xf32> -> vector<16x32xf32>
      %c0_36 = arith.constant 0 : index
      %c0_37 = arith.constant 0 : index
      %59 = vector.load %arg9[%c0_36, %c0_37] : memref<1x32xf32, #tpu.memory_space<vmem>>, vector<1x32xf32>
      %60 = vector.shape_cast %59 : vector<1x32xf32> to vector<32xf32>
      %61 = vector.shape_cast %60 : vector<32xf32> to vector<1x32xf32>
      %62 = vector.broadcast %61 : vector<1x32xf32> to vector<16x32xf32>
      %63 = arith.addf %58, %62 : vector<16x32xf32>
      %64 = vector.shape_cast %56 : vector<16x32xf32> to vector<16x4x8xf32>
      %65 = tpu.transpose %64, [1, 0, 2] : vector<16x4x8xf32> -> vector<4x16x8xf32>
      %66 = arith.truncf %65 : vector<4x16x8xf32> to vector<4x16x8xbf16>
      %c0_38 = arith.constant 0 : index
      %c0_39 = arith.constant 0 : index
      %c0_40 = arith.constant 0 : index
      %67 = vector.load %arg12[%c0_38, %c0_39, %c0_40] : memref<4x16x8xbf16, #tpu.memory_space<vmem>>, vector<4x16x8xbf16>
      tpu.vector_store %arg12[%c0_38, %c0_39, %c0_40], %66 {strides = array<i32>} : memref<4x16x8xbf16, #tpu.memory_space<vmem>>, vector<4x16x8xbf16>,
      %68 = vector.shape_cast %63 : vector<16x32xf32> to vector<16x4x8xf32>
      %69 = tpu.transpose %68, [1, 0, 2] : vector<16x4x8xf32> -> vector<4x16x8xf32>
      %70 = arith.truncf %69 : vector<4x16x8xf32> to vector<4x16x8xbf16>
      %c0_41 = arith.constant 0 : index
      %c0_42 = arith.constant 0 : index
      %c0_43 = arith.constant 0 : index
      %71 = vector.load %arg13[%c0_41, %c0_42, %c0_43] : memref<4x16x8xbf16, #tpu.memory_space<vmem>>, vector<4x16x8xbf16>
      tpu.vector_store %arg13[%c0_41, %c0_42, %c0_43], %70 {strides = array<i32>} : memref<4x16x8xbf16, #tpu.memory_space<vmem>>, vector<4x16x8xbf16>,
    } else {
    }
    %c8_i32 = arith.constant 8 : i32
    %3 = arith.muli %arg1, %c8_i32 : i32
    %4 = tpu.assume_multiple %3, 8 : i32
    %c0 = arith.constant 0 : index
    %5 = arith.index_cast %4 : i32 to index
    %c0_1 = arith.constant 0 : index
    %6 = vector.load %arg2[%c0, %5, %c0_1] : memref<1x16x32xbf16, #tpu.memory_space<vmem>>, vector<1x8x32xbf16>
    %7 = vector.shape_cast %6 : vector<1x8x32xbf16> to vector<8x32xbf16>
    %c0_2 = arith.constant 0 : index
    %c0_3 = arith.constant 0 : index
    %8 = vector.load %arg3[%c0_2, %c0_3] : memref<32x32xbf16, #tpu.memory_space<vmem>>, vector<32x32xbf16>
    %cst = arith.constant dense<0.000000e+00> : vector<8x32xf32>
    %9 = tpu.matmul %7, %8, %cst {dimension_numbers = #tpu.dot_dimension_numbers<[1], [1], [0], [0], [0, 0, 1, 0], [], []>} : vector<8x32xbf16>, vector<32x32xbf16>, vector<8x32xf32> -> vector<8x32xf32>
    %c0_4 = arith.constant 0 : index
    %c0_5 = arith.constant 0 : index
    %10 = vector.load %arg7[%c0_4, %c0_5] : memref<1x32xf32, #tpu.memory_space<vmem>>, vector<1x32xf32>
    %11 = vector.shape_cast %10 : vector<1x32xf32> to vector<32xf32>
    %12 = vector.shape_cast %11 : vector<32xf32> to vector<1x32xf32>
    %13 = vector.broadcast %12 : vector<1x32xf32> to vector<8x32xf32>
    %14 = arith.addf %9, %13 : vector<8x32xf32>
    %cst_6 = arith.constant 0.353553385 : f32
    %15 = vector.broadcast %cst_6 : f32 to vector<8x32xf32>
    %16 = arith.mulf %14, %15 : vector<8x32xf32>
    %17 = vector.shape_cast %16 : vector<8x32xf32> to vector<8x4x8xf32>
    %18 = tpu.transpose %17, [1, 0, 2] : vector<8x4x8xf32> -> vector<4x8x8xf32>
    %19 = arith.truncf %18 : vector<4x8x8xf32> to vector<4x8x8xbf16>
    %c0_7 = arith.constant 0 : index
    %c0_8 = arith.constant 0 : index
    %c0_9 = arith.constant 0 : index
    %20 = vector.load %arg12[%c0_7, %c0_8, %c0_9] : memref<4x16x8xbf16, #tpu.memory_space<vmem>>, vector<4x16x8xbf16>
    "tpu.trace_start"() <{level = 10 : i32, message = "hqd,hkd->hqk"}> : () -> ()
    %cst_10 = arith.constant dense<0.000000e+00> : vector<4x8x16xf32>
    %21 = tpu.matmul %19, %20, %cst_10 {dimension_numbers = #tpu.dot_dimension_numbers<[2], [2], [1], [1], [0, 0, 0, 1, 1, 1], [0], [0]>} : vector<4x8x8xbf16>, vector<4x16x8xbf16>, vector<4x8x16xf32> -> vector<4x8x16xf32>
    "tpu.trace_stop"() : () -> ()
    %cst_11 = arith.constant dense<0xFF800000> : vector<4x8xf32>
    %22 = vector.multi_reduction <maximumf>, %21, %cst_11 [2] : vector<4x8x16xf32> to vector<4x8xf32>
    %23 = vector.shape_cast %22 : vector<4x8xf32> to vector<4x8x1xf32>
    %24 = vector.broadcast %23 : vector<4x8x1xf32> to vector<4x8x16xf32>
    %25 = arith.subf %21, %24 : vector<4x8x16xf32>
    %26 = math.exp %25 : vector<4x8x16xf32>
    %cst_12 = arith.constant dense<0.000000e+00> : vector<4x8xf32>
    %27 = vector.multi_reduction <add>, %26, %cst_12 [2] : vector<4x8x16xf32> to vector<4x8xf32>
    %28 = vector.shape_cast %27 : vector<4x8xf32> to vector<4x8x1xf32>
    %29 = arith.truncf %26 : vector<4x8x16xf32> to vector<4x8x16xbf16>
    %c0_13 = arith.constant 0 : index
    %c0_14 = arith.constant 0 : index
    %c0_15 = arith.constant 0 : index
    %30 = vector.load %arg13[%c0_13, %c0_14, %c0_15] : memref<4x16x8xbf16, #tpu.memory_space<vmem>>, vector<4x16x8xbf16>
    "tpu.trace_start"() <{level = 10 : i32, message = "hqk,hkd->hqd"}> : () -> ()
    %cst_16 = arith.constant dense<0.000000e+00> : vector<4x8x8xf32>
    %31 = tpu.matmul %29, %30, %cst_16 {dimension_numbers = #tpu.dot_dimension_numbers<[2], [1], [1], [2], [0, 0, 0, 1, 1, 2], [0], [0]>} : vector<4x8x16xbf16>, vector<4x16x8xbf16>, vector<4x8x8xf32> -> vector<4x8x8xf32>
    "tpu.trace_stop"() : () -> ()
    %32 = tpu.reciprocal %28 {approx = true} : vector<4x8x1xf32> -> vector<4x8x1xf32>
    %33 = vector.broadcast %32 : vector<4x8x1xf32> to vector<4x8x8xf32>
    %34 = arith.mulf %31, %33 : vector<4x8x8xf32>
    %35 = tpu.transpose %34, [1, 0, 2] : vector<4x8x8xf32> -> vector<8x4x8xf32>
    %36 = vector.shape_cast %35 : vector<8x4x8xf32> to vector<8x32xf32>
    %37 = arith.truncf %36 : vector<8x32xf32> to vector<8x32xbf16>
    %c0_17 = arith.constant 0 : index
    %c0_18 = arith.constant 0 : index
    %38 = vector.load %arg6[%c0_17, %c0_18] : memref<32x32xbf16, #tpu.memory_space<vmem>>, vector<32x32xbf16>
    %cst_19 = arith.constant dense<0.000000e+00> : vector<8x32xf32>
    %39 = tpu.matmul %37, %38, %cst_19 {dimension_numbers = #tpu.dot_dimension_numbers<[1], [1], [0], [0], [0, 0, 1, 0], [], []>} : vector<8x32xbf16>, vector<32x32xbf16>, vector<8x32xf32> -> vector<8x32xf32>
    %c0_20 = arith.constant 0 : index
    %c0_21 = arith.constant 0 : index
    %40 = vector.load %arg10[%c0_20, %c0_21] : memref<1x32xf32, #tpu.memory_space<vmem>>, vector<1x32xf32>
    %41 = vector.shape_cast %40 : vector<1x32xf32> to vector<32xf32>
    %42 = vector.shape_cast %41 : vector<32xf32> to vector<1x32xf32>
    %43 = vector.broadcast %42 : vector<1x32xf32> to vector<8x32xf32>
    %44 = arith.addf %39, %43 : vector<8x32xf32>
    %c0_22 = arith.constant 0 : index
    %c0_23 = arith.constant 0 : index
    %c0_24 = arith.constant 0 : index
    %45 = vector.load %arg11[%c0_22, %c0_23, %c0_24] : memref<1x8x32xf32, #tpu.memory_space<vmem>>, vector<1x8x32xf32>
    %46 = vector.shape_cast %45 : vector<1x8x32xf32> to vector<8x32xf32>
    %47 = vector.shape_cast %44 : vector<8x32xf32> to vector<1x8x32xf32>
    tpu.vector_store %arg11[%c0_22, %c0_23, %c0_24], %47 {strides = array<i32>} : memref<1x8x32xf32, #tpu.memory_space<vmem>>, vector<1x8x32xf32>,
    return
  }
  func.func @transform_0(%arg0: i32, %arg1: i32) -> (i32, i32, i32) {
    %c0_i32 = arith.constant 0 : i32
    %c0_i32_0 = arith.constant 0 : i32
    %c0_i32_1 = arith.constant 0 : i32
    return %arg0, %c0_i32, %c0_i32_0 : i32, i32, i32
  }
  func.func @transform_1(%arg0: i32, %arg1: i32) -> (i32, i32) {
    %c0_i32 = arith.constant 0 : i32
    %c0_i32_0 = arith.constant 0 : i32
    %c0_i32_1 = arith.constant 0 : i32
    return %c0_i32, %c0_i32_0 : i32, i32
  }
  func.func @transform_2(%arg0: i32, %arg1: i32) -> (i32, i32) {
    %c0_i32 = arith.constant 0 : i32
    %c0_i32_0 = arith.constant 0 : i32
    %c0_i32_1 = arith.constant 0 : i32
    return %c0_i32, %c0_i32_0 : i32, i32
  }
  func.func @transform_3(%arg0: i32, %arg1: i32) -> (i32, i32) {
    %c0_i32 = arith.constant 0 : i32
    %c0_i32_0 = arith.constant 0 : i32
    %c0_i32_1 = arith.constant 0 : i32
    return %c0_i32, %c0_i32_0 : i32, i32
  }
  func.func @transform_4(%arg0: i32, %arg1: i32) -> (i32, i32) {
    %c0_i32 = arith.constant 0 : i32
    %c0_i32_0 = arith.constant 0 : i32
    %c0_i32_1 = arith.constant 0 : i32
    return %c0_i32, %c0_i32_0 : i32, i32
  }
  func.func @transform_5(%arg0: i32, %arg1: i32) -> (i32, i32) {
    %c0_i32 = arith.constant 0 : i32
    %c0_i32_0 = arith.constant 0 : i32
    %c0_i32_1 = arith.constant 0 : i32
    return %c0_i32, %c0_i32_0 : i32, i32
  }
  func.func @transform_6(%arg0: i32, %arg1: i32) -> (i32, i32) {
    %c0_i32 = arith.constant 0 : i32
    %c0_i32_0 = arith.constant 0 : i32
    %c0_i32_1 = arith.constant 0 : i32
    return %c0_i32, %c0_i32_0 : i32, i32
  }
  func.func @transform_7(%arg0: i32, %arg1: i32) -> (i32, i32) {
    %c0_i32 = arith.constant 0 : i32
    %c0_i32_0 = arith.constant 0 : i32
    %c0_i32_1 = arith.constant 0 : i32
    return %c0_i32, %c0_i32_0 : i32, i32
  }
  func.func @transform_8(%arg0: i32, %arg1: i32) -> (i32, i32) {
    %c0_i32 = arith.constant 0 : i32
    %c0_i32_0 = arith.constant 0 : i32
    %c0_i32_1 = arith.constant 0 : i32
    return %c0_i32, %c0_i32_0 : i32, i32
  }
  func.func @transform_9(%arg0: i32, %arg1: i32) -> (i32, i32, i32) {
    %c0_i32 = arith.constant 0 : i32
    %c0_i32_0 = arith.constant 0 : i32
    return %arg0, %arg1, %c0_i32 : i32, i32, i32
  }
}

</mosaic_0001>

<llo_original>
// kernel: tpu_custom_call.1
$region0: #{tpu_custom_call.1}
  #allocation0 [shape = 'u32[]', space=smem, size = 0x4, offset = 0x4, fixed_abs, tag = 'smem constant byte address 0x4 - core index']
  #allocation1 [shape = 'u32[144,128]{1,0:T(1,128)}', space=vmem, size = 0x12000, scoped, tag = 'internal scratch']
  #allocation2 [shape = 'bf16[4,16,8]{2,1,0:T(16,128)(2,1)}', space=vmem, size = 0x4000, scoped, tag = 'scratch operand']
  #allocation3 [shape = 'bf16[4,16,8]{2,1,0:T(16,128)(2,1)}', space=vmem, size = 0x4000, scoped, tag = 'scratch operand']
  %s0 = inlined_call_operand.hbm [shape: bf16[2,16,32], index: 0, kind: input, shape index: {}]
  %s1 = inlined_call_operand.hbm [shape: bf16[32,32], index: 1, kind: input, shape index: {}]
  %s2 = inlined_call_operand.hbm [shape: bf16[32,32], index: 2, kind: input, shape index: {}]
  %s3 = inlined_call_operand.hbm [shape: bf16[32,32], index: 3, kind: input, shape index: {}]
  %s4 = inlined_call_operand.hbm [shape: bf16[32,32], index: 4, kind: input, shape index: {}]
  %s5 = inlined_call_operand.vmem [shape: f32[1,32], index: 5, kind: input, shape index: {}]
  %s6 = inlined_call_operand.vmem [shape: f32[1,32], index: 6, kind: input, shape index: {}]
  %s7 = inlined_call_operand.vmem [shape: f32[1,32], index: 7, kind: input, shape index: {}]
  %s8 = inlined_call_operand.vmem [shape: f32[1,32], index: 8, kind: input, shape index: {}]
  %s9 = inlined_call_operand.hbm [shape: f32[2,16,32], index: 9, kind: output, shape index: {}]
  %s10 = sld [smem:[#allocation0]]
  $region93: #{tpu_custom_call.1} parent=0
    _
  %s12 = ssub.s32 1, %s10
  %s13 = scalar_select 0, %s12, %s10
  $region1: #{tpu_custom_call.1} parent=0
    #allocation4 [shape = 'u8[8192]{0}', space=vmem, size = 0x2000, scoped, tag = 'input window, operand 0']
    #allocation5 [shape = 's32[2]{0}', space=sflag, size = 0x8, scoped, tag = 'scoped memory for tpu_custom_call.1']
    #allocation6 [shape = 's32[2]{0}', space=sflag, size = 0x8, scoped, tag = 'scoped memory for tpu_custom_call.1']
    #allocation7 [shape = 'u8[8192]{0}', space=vmem, size = 0x2000, scoped, tag = 'input window, operand 1, single buffered']
    #allocation8 [shape = 's32[1]{0}', space=sflag, size = 0x4, scoped, tag = 'scoped memory for tpu_custom_call.1']
    #allocation9 [shape = 'u8[8192]{0}', space=vmem, size = 0x2000, scoped, tag = 'input window, operand 2, single buffered']
    #allocation10 [shape = 'u8[8192]{0}', space=vmem, size = 0x2000, scoped, tag = 'input window, operand 3, single buffered']
    #allocation11 [shape = 's32[1]{0}', space=sflag, size = 0x4, scoped, tag = 'scoped memory for tpu_custom_call.1']
    #allocation12 [shape = 'u8[8192]{0}', space=vmem, size = 0x2000, scoped, tag = 'input window, operand 4, single buffered']
    #allocation13 [shape = 'u8[8192]{0}', space=vmem, size = 0x2000, scoped, tag = 'output window, operand 0']
    %14 = vsyncpa [#allocation5], 0
    %s15 = scalar_lea.sflag [#allocation5], 1
    %16 = vsyncpa %s15, 0
    %17 = vsyncpa [#allocation8], 0
    %18 = vsyncpa [#allocation11], 0
    %19 = vsyncpa [#allocation6], 0
    %s20 = scalar_lea.sflag [#allocation6], 1
    %21 = vsyncpa %s20, 0
    loop: start=0, step=1, limit=6
    $region2: #{tpu_custom_call.1} parent=1 // loop_pre_header
      _
    $region3: #{tpu_custom_call.1} parent=1 // loop_header
      %s23 = sphi 0, %s27
      %p24 = scmp.ge.s32.totalorder %s23, 6
      %s30 = sphi 0, %s42
      %s31 = sphi 0, %s38
      %s32 = sphi 0, %s30
      %s33 = sphi 0, %s31
      %s34 = sphi 0, %s32
      %s35 = sphi 0, %s33
      %s45 = sphi 0, %s47
      %s48 = sphi 0, %s45
      %s49 = sphi 0, %s48
      %s65 = sphi 0, %s49
      %s69 = sphi 0, %s69
      %s71 = sphi 0, %s69
      %s72 = sphi 0, %s71
      %s86 = sphi 0, %s72
      %s90 = sphi 0, %s90
      %s92 = sphi 0, %s90
      %s93 = sphi 0, %s92
      %s107 = sphi 0, %s93
      %s111 = sphi 0, %s111
      %s113 = sphi 0, %s111
      %s114 = sphi 0, %s113
      %s128 = sphi 0, %s114
      %s132 = sphi 0, %s132
      %s134 = sphi 0, %s132
      %s135 = sphi 0, %s134
      %s149 = sphi 0, %s135
      %s153 = sphi 0, %s153
      %s155 = sphi 0, %s153
      %s156 = sphi 0, %s155
      %s170 = sphi 0, %s156
      %s174 = sphi 0, %s174
      %s176 = sphi 0, %s174
      %s177 = sphi 0, %s176
      %s191 = sphi 0, %s177
      %s195 = sphi 0, %s195
      %s197 = sphi 0, %s195
      %s198 = sphi 0, %s197
      %s212 = sphi 0, %s198
      %s216 = sphi 0, %s216
      %s218 = sphi 0, %s216
      %s219 = sphi 0, %s218
      %s233 = sphi 0, %s219
      %s241 = sphi 0, %s243
      %s244 = sphi 0, %s241
      %s245 = sphi 0, %s244
      %s261 = sphi 0, %s245
    $region4: #{tpu_custom_call.1} parent=1 // loop_header_branch
      %26 = sbr.rel (%p24) target = $region8
    $region5: #{tpu_custom_call.1} parent=1 // loop_body
      %s28 = ssub.s32 %s23, 1
      %s29 = ssub.s32 %s23, 2
      %s36 = sadd.s32 1, %s31
      %p37 = scmp.ge.s32.totalorder %s36, 2
      %s38 = scalar_select %p37, 0, %s36
      %s39 = sadd.s32 1, %s30
      %s40 = scalar_select %p37, %s39, %s30
      %p41 = scmp.ge.s32.totalorder %s40, 2
      %s42 = scalar_select %p41, 0, %s40
      %s43 = ssub.s32 %s30, %s42
      %p44 = scmp.eq.s32.totalorder %s43, 0
      %s46 = sadd.s32 %s45, 1
      %s47 = scalar_select %p44, %s45, %s46
      %p50 = pneg %p44
      %p51 = scmp.eq.s32.totalorder %s23, 3
      %p52 = por %p50, %p51
      %p53 = scmp.ne.s32.totalorder %s45, %s48
      %p54 = scmp.eq.s32.totalorder %s23, 0
      %p55 = por %p53, %p54
      %p56 = scmp.ne.s32.totalorder %s45, %s48
      %p57 = scmp.eq.s32.totalorder %s28, 3
      %p58 = por %p56, %p57
      %p59 = scmp.ne.s32.totalorder %s48, %s49
      %p60 = scmp.eq.s32.totalorder %s28, 0
      %p61 = por %p59, %p60
      %p62 = scmp.ne.s32.totalorder %s48, %s49
      %p63 = scmp.eq.s32.totalorder %s29, 3
      %p64 = por %p62, %p63
      %p66 = scmp.ne.s32.totalorder %s49, %s65
      %p67 = scmp.eq.s32.totalorder %s29, 0
      %p68 = por %p66, %p67
      %s70 = sadd.s32 %s69, 1
      %p73 = scmp.eq.s32.totalorder %s23, 3
      %p74 = scmp.ne.s32.totalorder %s69, %s71
      %p75 = scmp.eq.s32.totalorder %s23, 0
      %p76 = por %p74, %p75
      %p77 = scmp.ne.s32.totalorder %s69, %s71
      %p78 = scmp.eq.s32.totalorder %s28, 3
      %p79 = por %p77, %p78
      %p80 = scmp.ne.s32.totalorder %s71, %s72
      %p81 = scmp.eq.s32.totalorder %s28, 0
      %p82 = por %p80, %p81
      %p83 = scmp.ne.s32.totalorder %s71, %s72
      %p84 = scmp.eq.s32.totalorder %s29, 3
      %p85 = por %p83, %p84
      %p87 = scmp.ne.s32.totalorder %s72, %s86
      %p88 = scmp.eq.s32.totalorder %s29, 0
      %p89 = por %p87, %p88
      %s91 = sadd.s32 %s90, 1
      %p94 = scmp.eq.s32.totalorder %s23, 3
      %p95 = scmp.ne.s32.totalorder %s90, %s92
      %p96 = scmp.eq.s32.totalorder %s23, 0
      %p97 = por %p95, %p96
      %p98 = scmp.ne.s32.totalorder %s90, %s92
      %p99 = scmp.eq.s32.totalorder %s28, 3
      %p100 = por %p98, %p99
      %p101 = scmp.ne.s32.totalorder %s92, %s93
      %p102 = scmp.eq.s32.totalorder %s28, 0
      %p103 = por %p101, %p102
      %p104 = scmp.ne.s32.totalorder %s92, %s93
      %p105 = scmp.eq.s32.totalorder %s29, 3
      %p106 = por %p104, %p105
      %p108 = scmp.ne.s32.totalorder %s93, %s107
      %p109 = scmp.eq.s32.totalorder %s29, 0
      %p110 = por %p108, %p109
      %s112 = sadd.s32 %s111, 1
      %p115 = scmp.eq.s32.totalorder %s23, 3
      %p116 = scmp.ne.s32.totalorder %s111, %s113
      %p117 = scmp.eq.s32.totalorder %s23, 0
      %p118 = por %p116, %p117
      %p119 = scmp.ne.s32.totalorder %s111, %s113
      %p120 = scmp.eq.s32.totalorder %s28, 3
      %p121 = por %p119, %p120
      %p122 = scmp.ne.s32.totalorder %s113, %s114
      %p123 = scmp.eq.s32.totalorder %s28, 0
      %p124 = por %p122, %p123
      %p125 = scmp.ne.s32.totalorder %s113, %s114
      %p126 = scmp.eq.s32.totalorder %s29, 3
      %p127 = por %p125, %p126
      %p129 = scmp.ne.s32.totalorder %s114, %s128
      %p130 = scmp.eq.s32.totalorder %s29, 0
      %p131 = por %p129, %p130
      %s133 = sadd.s32 %s132, 1
      %p136 = scmp.eq.s32.totalorder %s23, 3
      %p137 = scmp.ne.s32.totalorder %s132, %s134
      %p138 = scmp.eq.s32.totalorder %s23, 0
      %p139 = por %p137, %p138
      %p140 = scmp.ne.s32.totalorder %s132, %s134
      %p141 = scmp.eq.s32.totalorder %s28, 3
      %p142 = por %p140, %p141
      %p143 = scmp.ne.s32.totalorder %s134, %s135
      %p144 = scmp.eq.s32.totalorder %s28, 0
      %p145 = por %p143, %p144
      %p146 = scmp.ne.s32.totalorder %s134, %s135
      %p147 = scmp.eq.s32.totalorder %s29, 3
      %p148 = por %p146, %p147
      %p150 = scmp.ne.s32.totalorder %s135, %s149
      %p151 = scmp.eq.s32.totalorder %s29, 0
      %p152 = por %p150, %p151
      %s154 = sadd.s32 %s153, 1
      %p157 = scmp.eq.s32.totalorder %s23, 3
      %p158 = scmp.ne.s32.totalorder %s153, %s155
      %p159 = scmp.eq.s32.totalorder %s23, 0
      %p160 = por %p158, %p159
      %p161 = scmp.ne.s32.totalorder %s153, %s155
      %p162 = scmp.eq.s32.totalorder %s28, 3
      %p163 = por %p161, %p162
      %p164 = scmp.ne.s32.totalorder %s155, %s156
      %p165 = scmp.eq.s32.totalorder %s28, 0
      %p166 = por %p164, %p165
      %p167 = scmp.ne.s32.totalorder %s155, %s156
      %p168 = scmp.eq.s32.totalorder %s29, 3
      %p169 = por %p167, %p168
      %p171 = scmp.ne.s32.totalorder %s156, %s170
      %p172 = scmp.eq.s32.totalorder %s29, 0
      %p173 = por %p171, %p172
      %s175 = sadd.s32 %s174, 1
      %p178 = scmp.eq.s32.totalorder %s23, 3
      %p179 = scmp.ne.s32.totalorder %s174, %s176
      %p180 = scmp.eq.s32.totalorder %s23, 0
      %p181 = por %p179, %p180
      %p182 = scmp.ne.s32.totalorder %s174, %s176
      %p183 = scmp.eq.s32.totalorder %s28, 3
      %p184 = por %p182, %p183
      %p185 = scmp.ne.s32.totalorder %s176, %s177
      %p186 = scmp.eq.s32.totalorder %s28, 0
      %p187 = por %p185, %p186
      %p188 = scmp.ne.s32.totalorder %s176, %s177
      %p189 = scmp.eq.s32.totalorder %s29, 3
      %p190 = por %p188, %p189
      %p192 = scmp.ne.s32.totalorder %s177, %s191
      %p193 = scmp.eq.s32.totalorder %s29, 0
      %p194 = por %p192, %p193
      %s196 = sadd.s32 %s195, 1
      %p199 = scmp.eq.s32.totalorder %s23, 3
      %p200 = scmp.ne.s32.totalorder %s195, %s197
      %p201 = scmp.eq.s32.totalorder %s23, 0
      %p202 = por %p200, %p201
      %p203 = scmp.ne.s32.totalorder %s195, %s197
      %p204 = scmp.eq.s32.totalorder %s28, 3
      %p205 = por %p203, %p204
      %p206 = scmp.ne.s32.totalorder %s197, %s198
      %p207 = scmp.eq.s32.totalorder %s28, 0
      %p208 = por %p206, %p207
      %p209 = scmp.ne.s32.totalorder %s197, %s198
      %p210 = scmp.eq.s32.totalorder %s29, 3
      %p211 = por %p209, %p210
      %p213 = scmp.ne.s32.totalorder %s198, %s212
      %p214 = scmp.eq.s32.totalorder %s29, 0
      %p215 = por %p213, %p214
      %s217 = sadd.s32 %s216, 1
      %p220 = scmp.eq.s32.totalorder %s23, 3
      %p221 = scmp.ne.s32.totalorder %s216, %s218
      %p222 = scmp.eq.s32.totalorder %s23, 0
      %p223 = por %p221, %p222
      %p224 = scmp.ne.s32.totalorder %s216, %s218
      %p225 = scmp.eq.s32.totalorder %s28, 3
      %p226 = por %p224, %p225
      %p227 = scmp.ne.s32.totalorder %s218, %s219
      %p228 = scmp.eq.s32.totalorder %s28, 0
      %p229 = por %p227, %p228
      %p230 = scmp.ne.s32.totalorder %s218, %s219
      %p231 = scmp.eq.s32.totalorder %s29, 3
      %p232 = por %p230, %p231
      %p234 = scmp.ne.s32.totalorder %s219, %s233
      %p235 = scmp.eq.s32.totalorder %s29, 0
      %p236 = por %p234, %p235
      %s237 = ssub.s32 %s30, %s42
      %s238 = ssub.s32 %s31, %s38
      %s239 = sor.u32 %s237, %s238
      %p240 = scmp.eq.s32.totalorder %s239, 0
      %s242 = sadd.s32 %s241, 1
      %s243 = scalar_select %p240, %s241, %s242
      %p246 = pneg %p240
      %p247 = scmp.eq.s32.totalorder %s23, 3
      %p248 = por %p246, %p247
      %p249 = scmp.ne.s32.totalorder %s241, %s244
      %p250 = scmp.eq.s32.totalorder %s23, 0
      %p251 = por %p249, %p250
      %p252 = scmp.ne.s32.totalorder %s241, %s244
      %p253 = scmp.eq.s32.totalorder %s28, 3
      %p254 = por %p252, %p253
      %p255 = scmp.ne.s32.totalorder %s244, %s245
      %p256 = scmp.eq.s32.totalorder %s28, 0
      %p257 = por %p255, %p256
      %p258 = scmp.ne.s32.totalorder %s244, %s245
      %p259 = scmp.eq.s32.totalorder %s29, 3
      %p260 = por %p258, %p259
      %p262 = scmp.ne.s32.totalorder %s245, %s261
      %p263 = scmp.eq.s32.totalorder %s29, 0
      %p264 = por %p262, %p263
      %p265 = scmp.le.s32.totalorder 1, %s23
      %p266 = scmp.lt.s32.totalorder %s23, 5
      %p267 = pnand %p265, %p266
      %p268 = pneg %p267
      // Predicated region
      $region9: #{tpu_custom_call.1} parent=5 // pred_check
        _
      $region10: #{tpu_custom_call.1} parent=5 // pred_check_branch
        %270 = sbr.rel (%p267) target = $region12
      $region11: #{tpu_custom_call.1} parent=5 // pred_region
        %s271 = ssub.s32 %s23, 1
        // Predicated region
        $region13: #{tpu_custom_call.1} parent=11 // pred_check
          %p272 = pneg %p82
        $region14: #{tpu_custom_call.1} parent=11 // pred_check_branch
          %274 = sbr.rel (%p272) target = $region16
        $region15: #{tpu_custom_call.1} parent=11 // pred_region
          %s276 = ssub.s32 256, 256
          %277 = vsyncadd [#allocation8], %s276
          %s278 = sshll.u32 [#allocation7], 4
          %s279 = int_to_ptr.vmem [resolvable:$true] %s278
          %284 = dma.hbm_to_vmem [thread:$0]  %s1, 256, %s279, [#allocation8], 64, 64, 4
        $region16: #{tpu_custom_call.1} parent=11 // pred_fallthru
          _
        // Predicated region
        $region17: #{tpu_custom_call.1} parent=11 // pred_check
          %p285 = pneg %p103
        $region18: #{tpu_custom_call.1} parent=11 // pred_check_branch
          %287 = sbr.rel (%p285) target = $region20
        $region19: #{tpu_custom_call.1} parent=11 // pred_region
          %s289 = ssub.s32 256, 256
          %290 = vsyncadd [#allocation8], %s289
          %s291 = sshll.u32 [#allocation9], 4
          %s292 = int_to_ptr.vmem [resolvable:$true] %s291
          %297 = dma.hbm_to_vmem [thread:$0]  %s2, 256, %s292, [#allocation8], 64, 64, 4
        $region20: #{tpu_custom_call.1} parent=11 // pred_fallthru
          _
        // Predicated region
        $region21: #{tpu_custom_call.1} parent=11 // pred_check
          %p298 = pneg %p124
        $region22: #{tpu_custom_call.1} parent=11 // pred_check_branch
          %300 = sbr.rel (%p298) target = $region24
        $region23: #{tpu_custom_call.1} parent=11 // pred_region
          %s302 = ssub.s32 256, 256
          %303 = vsyncadd [#allocation11], %s302
          %s304 = sshll.u32 [#allocation10], 4
          %s305 = int_to_ptr.vmem [resolvable:$true] %s304
          %310 = dma.hbm_to_vmem [thread:$0]  %s3, 256, %s305, [#allocation11], 64, 64, 4
        $region24: #{tpu_custom_call.1} parent=11 // pred_fallthru
          _
        // Predicated region
        $region25: #{tpu_custom_call.1} parent=11 // pred_check
          %p311 = pneg %p145
        $region26: #{tpu_custom_call.1} parent=11 // pred_check_branch
          %313 = sbr.rel (%p311) target = $region28
        $region27: #{tpu_custom_call.1} parent=11 // pred_region
          %s315 = ssub.s32 256, 256
          %316 = vsyncadd [#allocation11], %s315
          %s317 = sshll.u32 [#allocation12], 4
          %s318 = int_to_ptr.vmem [resolvable:$true] %s317
          %323 = dma.hbm_to_vmem [thread:$0]  %s4, 256, %s318, [#allocation11], 64, 64, 4
        $region28: #{tpu_custom_call.1} parent=11 // pred_fallthru
          _
        // Predicated region
        $region29: #{tpu_custom_call.1} parent=11 // pred_check
          %p324 = pneg %p166
        $region30: #{tpu_custom_call.1} parent=11 // pred_check_branch
          %326 = sbr.rel (%p324) target = $region32
        $region31: #{tpu_custom_call.1} parent=11 // pred_region
          _
        $region32: #{tpu_custom_call.1} parent=11 // pred_fallthru
          _
        // Predicated region
        $region33: #{tpu_custom_call.1} parent=11 // pred_check
          %p327 = pneg %p187
        $region34: #{tpu_custom_call.1} parent=11 // pred_check_branch
          %329 = sbr.rel (%p327) target = $region36
        $region35: #{tpu_custom_call.1} parent=11 // pred_region
          _
        $region36: #{tpu_custom_call.1} parent=11 // pred_fallthru
          _
        // Predicated region
        $region37: #{tpu_custom_call.1} parent=11 // pred_check
          %p330 = pneg %p208
        $region38: #{tpu_custom_call.1} parent=11 // pred_check_branch
          %332 = sbr.rel (%p330) target = $region40
        $region39: #{tpu_custom_call.1} parent=11 // pred_region
          _
        $region40: #{tpu_custom_call.1} parent=11 // pred_fallthru
          _
        // Predicated region
        $region41: #{tpu_custom_call.1} parent=11 // pred_check
          %p333 = pneg %p229
        $region42: #{tpu_custom_call.1} parent=11 // pred_check_branch
          %335 = sbr.rel (%p333) target = $region44
        $region43: #{tpu_custom_call.1} parent=11 // pred_region
          _
        $region44: #{tpu_custom_call.1} parent=11 // pred_fallthru
          _
      $region12: #{tpu_custom_call.1} parent=5 // pred_fallthru
        _
      %p336 = scmp.lt.s32.totalorder %s23, 4
      // Predicated region
      $region45: #{tpu_custom_call.1} parent=5 // pred_check
        %p337 = pneg %p336
      $region46: #{tpu_custom_call.1} parent=5 // pred_check_branch
        %339 = sbr.rel (%p337) target = $region48
      $region47: #{tpu_custom_call.1} parent=5 // pred_region
        // Predicated region
        $region49: #{tpu_custom_call.1} parent=47 // pred_check
          %p340 = pneg %p55
        $region50: #{tpu_custom_call.1} parent=47 // pred_check_branch
          %342 = sbr.rel (%p340) target = $region52
        $region51: #{tpu_custom_call.1} parent=47 // pred_region
          %s343 = sand.u32 %s45, 1
          %s344 = scalar_lea.sflag [#allocation5], %s343
          %s345 = sand.u32 %s45, 1
          %s346 = smul.addr %s345, 8
          %s347 = scalar_lea.vmem [#allocation4], %s346
          %s349 = ssub.s32 128, 128
          %350 = vsyncadd %s344, %s349
          %s351 = smul.addr %s30, 2
          %s352 = smul.addr %s351, 64
          %s353 = scalar_lea.hbm %s0, %s352
          %s354 = sshll.u32 %s347, 4
          %s355 = int_to_ptr.vmem [resolvable:$true] %s354
          %360 = dma.hbm_to_vmem [thread:$0]  %s353, 128, %s355, %s344, 64, 64, 4
        $region52: #{tpu_custom_call.1} parent=47 // pred_fallthru
          _
      $region48: #{tpu_custom_call.1} parent=5 // pred_fallthru
        _
      %p361 = scmp.le.s32.totalorder 1, %s23
      %p362 = scmp.lt.s32.totalorder %s23, 5
      %p363 = pnand %p361, %p362
      %p364 = pneg %p363
      // Predicated region
      $region53: #{tpu_custom_call.1} parent=5 // pred_check
        _
      $region54: #{tpu_custom_call.1} parent=5 // pred_check_branch
        %366 = sbr.rel (%p363) target = $region56
      $region55: #{tpu_custom_call.1} parent=5 // pred_region
        %s367 = ssub.s32 %s23, 1
        %s368 = sand.u32 %s48, 1
        %s369 = scalar_lea.sflag [#allocation5], %s368
        %s370 = sand.u32 %s48, 1
        %s371 = smul.addr %s370, 8
        %s372 = scalar_lea.vmem [#allocation4], %s371
        // Predicated region
        $region57: #{tpu_custom_call.1} parent=55 // pred_check
          %p373 = pneg %p61
        $region58: #{tpu_custom_call.1} parent=55 // pred_check_branch
          %375 = sbr.rel (%p373) target = $region60
        $region59: #{tpu_custom_call.1} parent=55 // pred_region
          %376 = dma.done %s369, 128
        $region60: #{tpu_custom_call.1} parent=55 // pred_fallthru
          _
        // Predicated region
        $region61: #{tpu_custom_call.1} parent=55 // pred_check
          %p377 = pneg %p82
        $region62: #{tpu_custom_call.1} parent=55 // pred_check_branch
          %379 = sbr.rel (%p377) target = $region64
        $region63: #{tpu_custom_call.1} parent=55 // pred_region
          %380 = dma.done [#allocation8], 256
        $region64: #{tpu_custom_call.1} parent=55 // pred_fallthru
          _
        // Predicated region
        $region65: #{tpu_custom_call.1} parent=55 // pred_check
          %p381 = pneg %p103
        $region66: #{tpu_custom_call.1} parent=55 // pred_check_branch
          %383 = sbr.rel (%p381) target = $region68
        $region67: #{tpu_custom_call.1} parent=55 // pred_region
          %384 = dma.done [#allocation8], 256
        $region68: #{tpu_custom_call.1} parent=55 // pred_fallthru
          _
        // Predicated region
        $region69: #{tpu_custom_call.1} parent=55 // pred_check
          %p385 = pneg %p124
        $region70: #{tpu_custom_call.1} parent=55 // pred_check_branch
          %387 = sbr.rel (%p385) target = $region72
        $region71: #{tpu_custom_call.1} parent=55 // pred_region
          %388 = dma.done [#allocation11], 256
        $region72: #{tpu_custom_call.1} parent=55 // pred_fallthru
          _
        // Predicated region
        $region73: #{tpu_custom_call.1} parent=55 // pred_check
          %p389 = pneg %p145
        $region74: #{tpu_custom_call.1} parent=55 // pred_check_branch
          %391 = sbr.rel (%p389) target = $region76
        $region75: #{tpu_custom_call.1} parent=55 // pred_region
          %392 = dma.done [#allocation11], 256
        $region76: #{tpu_custom_call.1} parent=55 // pred_fallthru
          _
        %s393 = sand.u32 %s48, 1
        %s394 = scalar_lea.sflag [#allocation5], %s393
        %s395 = sand.u32 %s48, 1
        %s396 = smul.addr %s395, 8
        %s397 = scalar_lea.vmem [#allocation4], %s396
        %p398 = pneg %p61
        %p399 = pneg %p58
        %p400 = pneg %p82
        %p401 = pneg %p79
        %p402 = pneg %p103
        %p403 = pneg %p100
        %p404 = pneg %p124
        %p405 = pneg %p121
        %p406 = pneg %p145
        %p407 = pneg %p142
        %p408 = pneg %p166
        %p409 = pneg %p163
        %p410 = pneg %p187
        %p411 = pneg %p184
        %p412 = pneg %p208
        %p413 = pneg %p205
        %p414 = pneg %p229
        %p415 = pneg %p226
        %p416 = pneg %p257
        %p417 = pneg %p254
        %s418 = sand.u32 %s244, 1
        %s419 = scalar_lea.sflag [#allocation6], %s418
        %s420 = sand.u32 %s244, 1
        %s421 = smul.addr %s420, 8
        %s422 = scalar_lea.vmem [#allocation13], %s421
        %p424 = scmp.eq.s32.totalorder %s33, 0
        // Predicated region
        $region77: #{tpu_custom_call.1} parent=55 // pred_check
          %p425 = pneg %p424
        $region78: #{tpu_custom_call.1} parent=55 // pred_check_branch
          %427 = sbr.rel (%p425) target = $region80
        $region79: #{tpu_custom_call.1} parent=55 // pred_region
          %v428 = vld [vmem:[%s372] sm:$0xf]
          %v429 = vld [vmem:[%s372 + $0x4] sm:$0xf]
          %v430 = vld [vmem:[#allocation9] sm:$0xf]
          %v431 = vld [vmem:[#allocation9 + $0x4] sm:$0xf]
          %v432 = vld [vmem:[#allocation9 + $0x8] sm:$0xf]
          %v433 = vld [vmem:[#allocation9 + $0xc] sm:$0xf]
          %v434 = vld [vmem:[%s6] sm:$0x1]
          %v436 = vlaneseq
          %v437 = vshrl.u32 %v436, 7
          %v438 = vsub.s32 0, %v437
          %v439 = vrot.slane %v434, %v438
          %v443 = vunpack.c.l.b16 %v428
          %v444 = vunpack.c.l.b16 %v429
          %v445 = vpack.c.b16 %v444, %v443
          %v450 = vunpack.c.l.b16 %v430
          %v451 = vunpack.c.l.b16 %v431
          %v452 = vunpack.c.l.b16 %v432
          %v453 = vunpack.c.l.b16 %v433
          %v454 = vpack.c.b16 %v451, %v450
          %v455 = vpack.c.b16 %v453, %v452
          %vm456 = vcmask 261120
          %v458 = vsel %vm456, %v445, 0
          %v461 = vsel %vm456, %v454, 0
          %v464 = vsel %vm456, %v455, 0
          %466 = vmatprep.subr.bf16.mxu0 0
          %467 = vmatpush1.bf16.xpose.msra.mxu0 %v461
          %468 = vmatprep.subr.bf16.mxu0 0
          %469 = vmatpush1.bf16.xpose.msra.mxu0 %v464
          %470 = vmatprep.subr.bf16.mxu0 0
          %471 = vmatpush1.bf16.xpose.msra.mxu0 0
          %472 = vmatprep.subr.bf16.mxu0 0
          %473 = vmatpush1.bf16.xpose.msra.mxu0 0
          %474 = vmatprep.subr.bf16.mxu0 0
          %475 = vmatpush1.bf16.xpose.msra.mxu0 0
          %476 = vmatprep.subr.bf16.mxu0 0
          %477 = vmatpush1.bf16.xpose.msra.mxu0 0
          %478 = vmatprep.subr.bf16.mxu0 0
          %479 = vmatpush1.bf16.xpose.msra.mxu0 0
          %480 = vmatprep.subr.bf16.mxu0 0
          %481 = vmatpush1.bf16.xpose.msra.mxu0 0
          %482 = vmatprep.subr.bf16.mxu0 0
          %483 = vmatpush1.bf16.xpose.msra.mxu0 0
          %484 = vmatprep.subr.bf16.mxu0 0
          %485 = vmatpush1.bf16.xpose.msra.mxu0 0
          %486 = vmatprep.subr.bf16.mxu0 0
          %487 = vmatpush1.bf16.xpose.msra.mxu0 0
          %488 = vmatprep.subr.bf16.mxu0 0
          %489 = vmatpush1.bf16.xpose.msra.mxu0 0
          %490 = vmatprep.subr.bf16.mxu0 0
          %491 = vmatpush1.bf16.xpose.msra.mxu0 0
          %492 = vmatprep.subr.bf16.mxu0 0
          %493 = vmatpush1.bf16.xpose.msra.mxu0 0
          %494 = vmatprep.subr.bf16.mxu0 0
          %495 = vmatpush1.bf16.xpose.msra.mxu0 0
          %496 = vmatprep.subr.bf16.mxu0 0
          %497 = vmatpush1.bf16.xpose.msra.mxu0 0
          %498 = vmatprep.mubr.bf16.mxu0 0
          %499 = vmatmul.mubr.bf16.gmra.mrb[0].mxu0 %v458
          %v500 = vpop.f32.mrb[0].mxu0
          %v501 = vadd.f32 %v439, %v500
          %v502 = vpop.f32.mrb[0].mxu0
          %v503 = vpop.f32.mrb[0].mxu0
          %v504 = vadd.f32 %v439, %v503
          %v505 = vpop.f32.mrb[0].mxu0
          %506 = vdwg.mxu0
          %v507 = vld [vmem:[#allocation10] sm:$0xf]
          %v508 = vld [vmem:[#allocation10 + $0x4] sm:$0xf]
          %v509 = vld [vmem:[#allocation10 + $0x8] sm:$0xf]
          %v510 = vld [vmem:[#allocation10 + $0xc] sm:$0xf]
          %v511 = vld [vmem:[%s7] sm:$0x1]
          %v513 = vlaneseq
          %v514 = vshrl.u32 %v513, 7
          %v515 = vsub.s32 0, %v514
          %v516 = vrot.slane %v511, %v515
          %v522 = vunpack.c.l.b16 %v507
          %v523 = vunpack.c.l.b16 %v508
          %v524 = vunpack.c.l.b16 %v509
          %v525 = vunpack.c.l.b16 %v510
          %v526 = vpack.c.b16 %v523, %v522
          %v527 = vpack.c.b16 %v525, %v524
          %v529 = vsel %vm456, %v526, 0
          %v532 = vsel %vm456, %v527, 0
          %534 = vmatprep.subr.bf16.mxu0 0
          %535 = vmatpush1.bf16.xpose.msra.mxu0 %v529
          %536 = vmatprep.subr.bf16.mxu0 0
          %537 = vmatpush1.bf16.xpose.msra.mxu0 %v532
          %538 = vmatprep.subr.bf16.mxu0 0
          %539 = vmatpush1.bf16.xpose.msra.mxu0 0
          %540 = vmatprep.subr.bf16.mxu0 0
          %541 = vmatpush1.bf16.xpose.msra.mxu0 0
          %542 = vmatprep.subr.bf16.mxu0 0
          %543 = vmatpush1.bf16.xpose.msra.mxu0 0
          %544 = vmatprep.subr.bf16.mxu0 0
          %545 = vmatpush1.bf16.xpose.msra.mxu0 0
          %546 = vmatprep.subr.bf16.mxu0 0
          %547 = vmatpush1.bf16.xpose.msra.mxu0 0
          %548 = vmatprep.subr.bf16.mxu0 0
          %549 = vmatpush1.bf16.xpose.msra.mxu0 0
          %550 = vmatprep.subr.bf16.mxu0 0
          %551 = vmatpush1.bf16.xpose.msra.mxu0 0
          %552 = vmatprep.subr.bf16.mxu0 0
          %553 = vmatpush1.bf16.xpose.msra.mxu0 0
          %554 = vmatprep.subr.bf16.mxu0 0
          %555 = vmatpush1.bf16.xpose.msra.mxu0 0
          %556 = vmatprep.subr.bf16.mxu0 0
          %557 = vmatpush1.bf16.xpose.msra.mxu0 0
          %558 = vmatprep.subr.bf16.mxu0 0
          %559 = vmatpush1.bf16.xpose.msra.mxu0 0
          %560 = vmatprep.subr.bf16.mxu0 0
          %561 = vmatpush1.bf16.xpose.msra.mxu0 0
          %562 = vmatprep.subr.bf16.mxu0 0
          %563 = vmatpush1.bf16.xpose.msra.mxu0 0
          %564 = vmatprep.subr.bf16.mxu0 0
          %565 = vmatpush1.bf16.xpose.msra.mxu0 0
          %566 = vmatprep.mubr.bf16.mxu0 0
          %567 = vmatmul.mubr.bf16.gmra.mrb[0].mxu0 %v458
          %v568 = vpop.f32.mrb[0].mxu0
          %v569 = vadd.f32 %v516, %v568
          %v570 = vpop.f32.mrb[0].mxu0
          %v571 = vpop.f32.mrb[0].mxu0
          %v572 = vadd.f32 %v516, %v571
          %v573 = vpop.f32.mrb[0].mxu0
          %574 = vdwg.mxu0
          %577 = vrot.lane.b32.xlu0 %v501, 120
          %v578 = vpop.permute.xlu0 %577
          %579 = vrot.lane.b32.xlu0 %v504, 120
          %v580 = vpop.permute.xlu0 %579
          %583 = vrot.lane.b32.xlu0 %v501, 112
          %v584 = vpop.permute.xlu0 %583
          %585 = vrot.lane.b32.xlu0 %v504, 112
          %v586 = vpop.permute.xlu0 %585
          %589 = vrot.lane.b32.xlu0 %v501, 104
          %v590 = vpop.permute.xlu0 %589
          %591 = vrot.lane.b32.xlu0 %v504, 104
          %v592 = vpop.permute.xlu0 %591
          %v595 = vcombine.low %v501, %v584
          %v596 = vcombine.high %v501, %v584
          %v598 = vunpack.c.l.s4 1983009808
          %v599 = vunpack.c.0.s8 %v598
          %v600 = vlaneseq
          %v601 = vshrl.u32 %v600, 7
          %v602 = vsub.s32 %v599, %v601
          %v603 = vrot.slane %v595, %v602
          %v605 = vunpack.c.l.s4 1983009808
          %v606 = vunpack.c.0.s8 %v605
          %v607 = vlaneseq
          %v608 = vshrl.u32 %v607, 7
          %v609 = vsub.s32 %v606, %v608
          %v610 = vrot.slane %v596, %v609
          %v611 = vcombine.low %v578, %v590
          %v612 = vcombine.high %v578, %v590
          %v614 = vunpack.c.l.s4 1983009808
          %v615 = vunpack.c.0.s8 %v614
          %v616 = vlaneseq
          %v617 = vshrl.u32 %v616, 7
          %v618 = vsub.s32 %v615, %v617
          %v619 = vrot.slane %v611, %v618
          %v621 = vunpack.c.l.s4 1983009808
          %v622 = vunpack.c.0.s8 %v621
          %v623 = vlaneseq
          %v624 = vshrl.u32 %v623, 7
          %v625 = vsub.s32 %v622, %v624
          %v626 = vrot.slane %v612, %v625
          %v627 = vcombine.low %v603, %v619
          %v628 = vcombine.high %v603, %v619
          %v630 = vunpack.c.l.s4 1934713408
          %v631 = vunpack.c.0.s8 %v630
          %v632 = vlaneseq
          %v633 = vshrl.u32 %v632, 7
          %v634 = vsub.s32 %v631, %v633
          %v635 = vrot.slane %v627, %v634
          %v637 = vunpack.c.l.s4 1934713408
          %v638 = vunpack.c.0.s8 %v637
          %v639 = vlaneseq
          %v640 = vshrl.u32 %v639, 7
          %v641 = vsub.s32 %v638, %v640
          %v642 = vrot.slane %v628, %v641
          %v643 = vcombine.low %v610, %v626
          %v644 = vcombine.high %v610, %v626
          %v646 = vunpack.c.l.s4 1934713408
          %v647 = vunpack.c.0.s8 %v646
          %v648 = vlaneseq
          %v649 = vshrl.u32 %v648, 7
          %v650 = vsub.s32 %v647, %v649
          %v651 = vrot.slane %v643, %v650
          %v653 = vunpack.c.l.s4 1934713408
          %v654 = vunpack.c.0.s8 %v653
          %v655 = vlaneseq
          %v656 = vshrl.u32 %v655, 7
          %v657 = vsub.s32 %v654, %v656
          %v658 = vrot.slane %v644, %v657
          %v659 = vcombine.high %v635, 0.0
          %v660 = vcombine.high %v642, 0.0
          %v661 = vcombine.high %v651, 0.0
          %v662 = vcombine.high %v658, 0.0
          %v663 = vcombine.low %v504, %v586
          %v664 = vcombine.high %v504, %v586
          %v666 = vunpack.c.l.s4 1983009808
          %v667 = vunpack.c.0.s8 %v666
          %v668 = vlaneseq
          %v669 = vshrl.u32 %v668, 7
          %v670 = vsub.s32 %v667, %v669
          %v671 = vrot.slane %v663, %v670
          %v673 = vunpack.c.l.s4 1983009808
          %v674 = vunpack.c.0.s8 %v673
          %v675 = vlaneseq
          %v676 = vshrl.u32 %v675, 7
          %v677 = vsub.s32 %v674, %v676
          %v678 = vrot.slane %v664, %v677
          %v679 = vcombine.low %v580, %v592
          %v680 = vcombine.high %v580, %v592
          %v682 = vunpack.c.l.s4 1983009808
          %v683 = vunpack.c.0.s8 %v682
          %v684 = vlaneseq
          %v685 = vshrl.u32 %v684, 7
          %v686 = vsub.s32 %v683, %v685
          %v687 = vrot.slane %v679, %v686
          %v689 = vunpack.c.l.s4 1983009808
          %v690 = vunpack.c.0.s8 %v689
          %v691 = vlaneseq
          %v692 = vshrl.u32 %v691, 7
          %v693 = vsub.s32 %v690, %v692
          %v694 = vrot.slane %v680, %v693
          %v695 = vcombine.low %v671, %v687
          %v696 = vcombine.high %v671, %v687
          %v698 = vunpack.c.l.s4 1934713408
          %v699 = vunpack.c.0.s8 %v698
          %v700 = vlaneseq
          %v701 = vshrl.u32 %v700, 7
          %v702 = vsub.s32 %v699, %v701
          %v703 = vrot.slane %v695, %v702
          %v705 = vunpack.c.l.s4 1934713408
          %v706 = vunpack.c.0.s8 %v705
          %v707 = vlaneseq
          %v708 = vshrl.u32 %v707, 7
          %v709 = vsub.s32 %v706, %v708
          %v710 = vrot.slane %v696, %v709
          %v711 = vcombine.low %v678, %v694
          %v712 = vcombine.high %v678, %v694
          %v714 = vunpack.c.l.s4 1934713408
          %v715 = vunpack.c.0.s8 %v714
          %v716 = vlaneseq
          %v717 = vshrl.u32 %v716, 7
          %v718 = vsub.s32 %v715, %v717
          %v719 = vrot.slane %v711, %v718
          %v721 = vunpack.c.l.s4 1934713408
          %v722 = vunpack.c.0.s8 %v721
          %v723 = vlaneseq
          %v724 = vshrl.u32 %v723, 7
          %v725 = vsub.s32 %v722, %v724
          %v726 = vrot.slane %v712, %v725
          %v727 = vcombine.high %v703, 0.0
          %v728 = vcombine.high %v710, 0.0
          %v729 = vcombine.high %v719, 0.0
          %v730 = vcombine.high %v726, 0.0
          %v731 = vcombine.low %v635, %v642
          %v733 = vunpack.c.l.s4 1983009808
          %v734 = vunpack.c.0.s8 %v733
          %v735 = vlaneseq
          %v736 = vshrl.u32 %v735, 7
          %v737 = vsub.s32 %v734, %v736
          %v738 = vrot.slane %v731, %v737
          %v739 = vcombine.low %v659, %v660
          %v741 = vunpack.c.l.s4 1983009808
          %v742 = vunpack.c.0.s8 %v741
          %v743 = vlaneseq
          %v744 = vshrl.u32 %v743, 7
          %v745 = vsub.s32 %v742, %v744
          %v746 = vrot.slane %v739, %v745
          %v747 = vcombine.low %v651, %v658
          %v749 = vunpack.c.l.s4 1983009808
          %v750 = vunpack.c.0.s8 %v749
          %v751 = vlaneseq
          %v752 = vshrl.u32 %v751, 7
          %v753 = vsub.s32 %v750, %v752
          %v754 = vrot.slane %v747, %v753
          %v755 = vcombine.low %v661, %v662
          %v757 = vunpack.c.l.s4 1983009808
          %v758 = vunpack.c.0.s8 %v757
          %v759 = vlaneseq
          %v760 = vshrl.u32 %v759, 7
          %v761 = vsub.s32 %v758, %v760
          %v762 = vrot.slane %v755, %v761
          %v763 = vcombine.low %v738, %v746
          %v764 = vcombine.high %v738, %v746
          %v766 = vunpack.c.l.s4 1934713408
          %v767 = vunpack.c.0.s8 %v766
          %v768 = vlaneseq
          %v769 = vshrl.u32 %v768, 7
          %v770 = vsub.s32 %v767, %v769
          %v771 = vrot.slane %v763, %v770
          %v773 = vunpack.c.l.s4 1934713408
          %v774 = vunpack.c.0.s8 %v773
          %v775 = vlaneseq
          %v776 = vshrl.u32 %v775, 7
          %v777 = vsub.s32 %v774, %v776
          %v778 = vrot.slane %v764, %v777
          %v779 = vcombine.low %v754, %v762
          %v780 = vcombine.high %v754, %v762
          %v782 = vunpack.c.l.s4 1934713408
          %v783 = vunpack.c.0.s8 %v782
          %v784 = vlaneseq
          %v785 = vshrl.u32 %v784, 7
          %v786 = vsub.s32 %v783, %v785
          %v787 = vrot.slane %v779, %v786
          %v789 = vunpack.c.l.s4 1934713408
          %v790 = vunpack.c.0.s8 %v789
          %v791 = vlaneseq
          %v792 = vshrl.u32 %v791, 7
          %v793 = vsub.s32 %v790, %v792
          %v794 = vrot.slane %v780, %v793
          %v795 = vcombine.low %v771, %v787
          %v796 = vcombine.high %v771, %v787
          %v797 = vcombine.low %v778, %v794
          %v798 = vcombine.high %v778, %v794
          %v799 = vcombine.low %v703, %v710
          %v801 = vunpack.c.l.s4 1983009808
          %v802 = vunpack.c.0.s8 %v801
          %v803 = vlaneseq
          %v804 = vshrl.u32 %v803, 7
          %v805 = vsub.s32 %v802, %v804
          %v806 = vrot.slane %v799, %v805
          %v807 = vcombine.low %v727, %v728
          %v809 = vunpack.c.l.s4 1983009808
          %v810 = vunpack.c.0.s8 %v809
          %v811 = vlaneseq
          %v812 = vshrl.u32 %v811, 7
          %v813 = vsub.s32 %v810, %v812
          %v814 = vrot.slane %v807, %v813
          %v815 = vcombine.low %v719, %v726
          %v817 = vunpack.c.l.s4 1983009808
          %v818 = vunpack.c.0.s8 %v817
          %v819 = vlaneseq
          %v820 = vshrl.u32 %v819, 7
          %v821 = vsub.s32 %v818, %v820
          %v822 = vrot.slane %v815, %v821
          %v823 = vcombine.low %v729, %v730
          %v825 = vunpack.c.l.s4 1983009808
          %v826 = vunpack.c.0.s8 %v825
          %v827 = vlaneseq
          %v828 = vshrl.u32 %v827, 7
          %v829 = vsub.s32 %v826, %v828
          %v830 = vrot.slane %v823, %v829
          %v831 = vcombine.low %v806, %v814
          %v832 = vcombine.high %v806, %v814
          %v834 = vunpack.c.l.s4 1934713408
          %v835 = vunpack.c.0.s8 %v834
          %v836 = vlaneseq
          %v837 = vshrl.u32 %v836, 7
          %v838 = vsub.s32 %v835, %v837
          %v839 = vrot.slane %v831, %v838
          %v841 = vunpack.c.l.s4 1934713408
          %v842 = vunpack.c.0.s8 %v841
          %v843 = vlaneseq
          %v844 = vshrl.u32 %v843, 7
          %v845 = vsub.s32 %v842, %v844
          %v846 = vrot.slane %v832, %v845
          %v847 = vcombine.low %v822, %v830
          %v848 = vcombine.high %v822, %v830
          %v850 = vunpack.c.l.s4 1934713408
          %v851 = vunpack.c.0.s8 %v850
          %v852 = vlaneseq
          %v853 = vshrl.u32 %v852, 7
          %v854 = vsub.s32 %v851, %v853
          %v855 = vrot.slane %v847, %v854
          %v857 = vunpack.c.l.s4 1934713408
          %v858 = vunpack.c.0.s8 %v857
          %v859 = vlaneseq
          %v860 = vshrl.u32 %v859, 7
          %v861 = vsub.s32 %v858, %v860
          %v862 = vrot.slane %v848, %v861
          %v863 = vcombine.low %v839, %v855
          %v864 = vcombine.high %v839, %v855
          %v865 = vcombine.low %v846, %v862
          %v866 = vcombine.high %v846, %v862
          %v867 = vpack.c.bf16 %v863, %v795
          %v868 = vpack.c.bf16 %v864, %v796
          %v869 = vpack.c.bf16 %v865, %v797
          %v870 = vpack.c.bf16 %v866, %v798
          %vm871 = vcmask 64512
          %872 = vst.msk [vmem:[#allocation2] sm:$0xff] %vm871, %v867
          %873 = vst.msk [vmem:[#allocation2 + $0x8] sm:$0xff] %vm871, %v868
          %874 = vst.msk [vmem:[#allocation2 + $0x10] sm:$0xff] %vm871, %v869
          %875 = vst.msk [vmem:[#allocation2 + $0x18] sm:$0xff] %vm871, %v870
          %878 = vrot.lane.b32.xlu0 %v569, 120
          %v879 = vpop.permute.xlu0 %878
          %880 = vrot.lane.b32.xlu0 %v572, 120
          %v881 = vpop.permute.xlu0 %880
          %884 = vrot.lane.b32.xlu0 %v569, 112
          %v885 = vpop.permute.xlu0 %884
          %886 = vrot.lane.b32.xlu0 %v572, 112
          %v887 = vpop.permute.xlu0 %886
          %890 = vrot.lane.b32.xlu0 %v569, 104
          %v891 = vpop.permute.xlu0 %890
          %892 = vrot.lane.b32.xlu0 %v572, 104
          %v893 = vpop.permute.xlu0 %892
          %v896 = vcombine.low %v569, %v885
          %v897 = vcombine.high %v569, %v885
          %v899 = vunpack.c.l.s4 1983009808
          %v900 = vunpack.c.0.s8 %v899
          %v901 = vlaneseq
          %v902 = vshrl.u32 %v901, 7
          %v903 = vsub.s32 %v900, %v902
          %v904 = vrot.slane %v896, %v903
          %v906 = vunpack.c.l.s4 1983009808
          %v907 = vunpack.c.0.s8 %v906
          %v908 = vlaneseq
          %v909 = vshrl.u32 %v908, 7
          %v910 = vsub.s32 %v907, %v909
          %v911 = vrot.slane %v897, %v910
          %v912 = vcombine.low %v879, %v891
          %v913 = vcombine.high %v879, %v891
          %v915 = vunpack.c.l.s4 1983009808
          %v916 = vunpack.c.0.s8 %v915
          %v917 = vlaneseq
          %v918 = vshrl.u32 %v917, 7
          %v919 = vsub.s32 %v916, %v918
          %v920 = vrot.slane %v912, %v919
          %v922 = vunpack.c.l.s4 1983009808
          %v923 = vunpack.c.0.s8 %v922
          %v924 = vlaneseq
          %v925 = vshrl.u32 %v924, 7
          %v926 = vsub.s32 %v923, %v925
          %v927 = vrot.slane %v913, %v926
          %v928 = vcombine.low %v904, %v920
          %v929 = vcombine.high %v904, %v920
          %v931 = vunpack.c.l.s4 1934713408
          %v932 = vunpack.c.0.s8 %v931
          %v933 = vlaneseq
          %v934 = vshrl.u32 %v933, 7
          %v935 = vsub.s32 %v932, %v934
          %v936 = vrot.slane %v928, %v935
          %v938 = vunpack.c.l.s4 1934713408
          %v939 = vunpack.c.0.s8 %v938
          %v940 = vlaneseq
          %v941 = vshrl.u32 %v940, 7
          %v942 = vsub.s32 %v939, %v941
          %v943 = vrot.slane %v929, %v942
          %v944 = vcombine.low %v911, %v927
          %v945 = vcombine.high %v911, %v927
          %v947 = vunpack.c.l.s4 1934713408
          %v948 = vunpack.c.0.s8 %v947
          %v949 = vlaneseq
          %v950 = vshrl.u32 %v949, 7
          %v951 = vsub.s32 %v948, %v950
          %v952 = vrot.slane %v944, %v951
          %v954 = vunpack.c.l.s4 1934713408
          %v955 = vunpack.c.0.s8 %v954
          %v956 = vlaneseq
          %v957 = vshrl.u32 %v956, 7
          %v958 = vsub.s32 %v955, %v957
          %v959 = vrot.slane %v945, %v958
          %v960 = vcombine.high %v936, 0.0
          %v961 = vcombine.high %v943, 0.0
          %v962 = vcombine.high %v952, 0.0
          %v963 = vcombine.high %v959, 0.0
          %v964 = vcombine.low %v572, %v887
          %v965 = vcombine.high %v572, %v887
          %v967 = vunpack.c.l.s4 1983009808
          %v968 = vunpack.c.0.s8 %v967
          %v969 = vlaneseq
          %v970 = vshrl.u32 %v969, 7
          %v971 = vsub.s32 %v968, %v970
          %v972 = vrot.slane %v964, %v971
          %v974 = vunpack.c.l.s4 1983009808
          %v975 = vunpack.c.0.s8 %v974
          %v976 = vlaneseq
          %v977 = vshrl.u32 %v976, 7
          %v978 = vsub.s32 %v975, %v977
          %v979 = vrot.slane %v965, %v978
          %v980 = vcombine.low %v881, %v893
          %v981 = vcombine.high %v881, %v893
          %v983 = vunpack.c.l.s4 1983009808
          %v984 = vunpack.c.0.s8 %v983
          %v985 = vlaneseq
          %v986 = vshrl.u32 %v985, 7
          %v987 = vsub.s32 %v984, %v986
          %v988 = vrot.slane %v980, %v987
          %v990 = vunpack.c.l.s4 1983009808
          %v991 = vunpack.c.0.s8 %v990
          %v992 = vlaneseq
          %v993 = vshrl.u32 %v992, 7
          %v994 = vsub.s32 %v991, %v993
          %v995 = vrot.slane %v981, %v994
          %v996 = vcombine.low %v972, %v988
          %v997 = vcombine.high %v972, %v988
          %v999 = vunpack.c.l.s4 1934713408
          %v1000 = vunpack.c.0.s8 %v999
          %v1001 = vlaneseq
          %v1002 = vshrl.u32 %v1001, 7
          %v1003 = vsub.s32 %v1000, %v1002
          %v1004 = vrot.slane %v996, %v1003
          %v1006 = vunpack.c.l.s4 1934713408
          %v1007 = vunpack.c.0.s8 %v1006
          %v1008 = vlaneseq
          %v1009 = vshrl.u32 %v1008, 7
          %v1010 = vsub.s32 %v1007, %v1009
          %v1011 = vrot.slane %v997, %v1010
          %v1012 = vcombine.low %v979, %v995
          %v1013 = vcombine.high %v979, %v995
          %v1015 = vunpack.c.l.s4 1934713408
          %v1016 = vunpack.c.0.s8 %v1015
          %v1017 = vlaneseq
          %v1018 = vshrl.u32 %v1017, 7
          %v1019 = vsub.s32 %v1016, %v1018
          %v1020 = vrot.slane %v1012, %v1019
          %v1022 = vunpack.c.l.s4 1934713408
          %v1023 = vunpack.c.0.s8 %v1022
          %v1024 = vlaneseq
          %v1025 = vshrl.u32 %v1024, 7
          %v1026 = vsub.s32 %v1023, %v1025
          %v1027 = vrot.slane %v1013, %v1026
          %v1028 = vcombine.high %v1004, 0.0
          %v1029 = vcombine.high %v1011, 0.0
          %v1030 = vcombine.high %v1020, 0.0
          %v1031 = vcombine.high %v1027, 0.0
          %v1032 = vcombine.low %v936, %v943
          %v1034 = vunpack.c.l.s4 1983009808
          %v1035 = vunpack.c.0.s8 %v1034
          %v1036 = vlaneseq
          %v1037 = vshrl.u32 %v1036, 7
          %v1038 = vsub.s32 %v1035, %v1037
          %v1039 = vrot.slane %v1032, %v1038
          %v1040 = vcombine.low %v960, %v961
          %v1042 = vunpack.c.l.s4 1983009808
          %v1043 = vunpack.c.0.s8 %v1042
          %v1044 = vlaneseq
          %v1045 = vshrl.u32 %v1044, 7
          %v1046 = vsub.s32 %v1043, %v1045
          %v1047 = vrot.slane %v1040, %v1046
          %v1048 = vcombine.low %v952, %v959
          %v1050 = vunpack.c.l.s4 1983009808
          %v1051 = vunpack.c.0.s8 %v1050
          %v1052 = vlaneseq
          %v1053 = vshrl.u32 %v1052, 7
          %v1054 = vsub.s32 %v1051, %v1053
          %v1055 = vrot.slane %v1048, %v1054
          %v1056 = vcombine.low %v962, %v963
          %v1058 = vunpack.c.l.s4 1983009808
          %v1059 = vunpack.c.0.s8 %v1058
          %v1060 = vlaneseq
          %v1061 = vshrl.u32 %v1060, 7
          %v1062 = vsub.s32 %v1059, %v1061
          %v1063 = vrot.slane %v1056, %v1062
          %v1064 = vcombine.low %v1039, %v1047
          %v1065 = vcombine.high %v1039, %v1047
          %v1067 = vunpack.c.l.s4 1934713408
          %v1068 = vunpack.c.0.s8 %v1067
          %v1069 = vlaneseq
          %v1070 = vshrl.u32 %v1069, 7
          %v1071 = vsub.s32 %v1068, %v1070
          %v1072 = vrot.slane %v1064, %v1071
          %v1074 = vunpack.c.l.s4 1934713408
          %v1075 = vunpack.c.0.s8 %v1074
          %v1076 = vlaneseq
          %v1077 = vshrl.u32 %v1076, 7
          %v1078 = vsub.s32 %v1075, %v1077
          %v1079 = vrot.slane %v1065, %v1078
          %v1080 = vcombine.low %v1055, %v1063
          %v1081 = vcombine.high %v1055, %v1063
          %v1083 = vunpack.c.l.s4 1934713408
          %v1084 = vunpack.c.0.s8 %v1083
          %v1085 = vlaneseq
          %v1086 = vshrl.u32 %v1085, 7
          %v1087 = vsub.s32 %v1084, %v1086
          %v1088 = vrot.slane %v1080, %v1087
          %v1090 = vunpack.c.l.s4 1934713408
          %v1091 = vunpack.c.0.s8 %v1090
          %v1092 = vlaneseq
          %v1093 = vshrl.u32 %v1092, 7
          %v1094 = vsub.s32 %v1091, %v1093
          %v1095 = vrot.slane %v1081, %v1094
          %v1096 = vcombine.low %v1072, %v1088
          %v1097 = vcombine.high %v1072, %v1088
          %v1098 = vcombine.low %v1079, %v1095
          %v1099 = vcombine.high %v1079, %v1095
          %v1100 = vcombine.low %v1004, %v1011
          %v1102 = vunpack.c.l.s4 1983009808
          %v1103 = vunpack.c.0.s8 %v1102
          %v1104 = vlaneseq
          %v1105 = vshrl.u32 %v1104, 7
          %v1106 = vsub.s32 %v1103, %v1105
          %v1107 = vrot.slane %v1100, %v1106
          %v1108 = vcombine.low %v1028, %v1029
          %v1110 = vunpack.c.l.s4 1983009808
          %v1111 = vunpack.c.0.s8 %v1110
          %v1112 = vlaneseq
          %v1113 = vshrl.u32 %v1112, 7
          %v1114 = vsub.s32 %v1111, %v1113
          %v1115 = vrot.slane %v1108, %v1114
          %v1116 = vcombine.low %v1020, %v1027
          %v1118 = vunpack.c.l.s4 1983009808
          %v1119 = vunpack.c.0.s8 %v1118
          %v1120 = vlaneseq
          %v1121 = vshrl.u32 %v1120, 7
          %v1122 = vsub.s32 %v1119, %v1121
          %v1123 = vrot.slane %v1116, %v1122
          %v1124 = vcombine.low %v1030, %v1031
          %v1126 = vunpack.c.l.s4 1983009808
          %v1127 = vunpack.c.0.s8 %v1126
          %v1128 = vlaneseq
          %v1129 = vshrl.u32 %v1128, 7
          %v1130 = vsub.s32 %v1127, %v1129
          %v1131 = vrot.slane %v1124, %v1130
          %v1132 = vcombine.low %v1107, %v1115
          %v1133 = vcombine.high %v1107, %v1115
          %v1135 = vunpack.c.l.s4 1934713408
          %v1136 = vunpack.c.0.s8 %v1135
          %v1137 = vlaneseq
          %v1138 = vshrl.u32 %v1137, 7
          %v1139 = vsub.s32 %v1136, %v1138
          %v1140 = vrot.slane %v1132, %v1139
          %v1142 = vunpack.c.l.s4 1934713408
          %v1143 = vunpack.c.0.s8 %v1142
          %v1144 = vlaneseq
          %v1145 = vshrl.u32 %v1144, 7
          %v1146 = vsub.s32 %v1143, %v1145
          %v1147 = vrot.slane %v1133, %v1146
          %v1148 = vcombine.low %v1123, %v1131
          %v1149 = vcombine.high %v1123, %v1131
          %v1151 = vunpack.c.l.s4 1934713408
          %v1152 = vunpack.c.0.s8 %v1151
          %v1153 = vlaneseq
          %v1154 = vshrl.u32 %v1153, 7
          %v1155 = vsub.s32 %v1152, %v1154
          %v1156 = vrot.slane %v1148, %v1155
          %v1158 = vunpack.c.l.s4 1934713408
          %v1159 = vunpack.c.0.s8 %v1158
          %v1160 = vlaneseq
          %v1161 = vshrl.u32 %v1160, 7
          %v1162 = vsub.s32 %v1159, %v1161
          %v1163 = vrot.slane %v1149, %v1162
          %v1164 = vcombine.low %v1140, %v1156
          %v1165 = vcombine.high %v1140, %v1156
          %v1166 = vcombine.low %v1147, %v1163
          %v1167 = vcombine.high %v1147, %v1163
          %v1168 = vpack.c.bf16 %v1164, %v1096
          %v1169 = vpack.c.bf16 %v1165, %v1097
          %v1170 = vpack.c.bf16 %v1166, %v1098
          %v1171 = vpack.c.bf16 %v1167, %v1099
          %1172 = vst.msk [vmem:[#allocation3] sm:$0xff] %vm871, %v1168
          %1173 = vst.msk [vmem:[#allocation3 + $0x8] sm:$0xff] %vm871, %v1169
          %1174 = vst.msk [vmem:[#allocation3 + $0x10] sm:$0xff] %vm871, %v1170
          %1175 = vst.msk [vmem:[#allocation3 + $0x18] sm:$0xff] %vm871, %v1171
        $region80: #{tpu_custom_call.1} parent=55 // pred_fallthru
          _
        %s1176 = smul.u32 %s33, 8
        %s1177 = sshra.s32 %s1176, 3
        %s1178 = sand.u32 %s1176, 7
        %s1179 = smul.addr %s1177, 4
        %s1180 = scalar_lea.vmem %s372, %s1179 [#allocation4]
        %v1181 = vld [vmem:[%s1180] sm:$0xf]
        %v1182 = vld [vmem:[#allocation7] sm:$0xf]
        %v1183 = vld [vmem:[#allocation7 + $0x4] sm:$0xf]
        %v1184 = vld [vmem:[#allocation7 + $0x8] sm:$0xf]
        %v1185 = vld [vmem:[#allocation7 + $0xc] sm:$0xf]
        %v1186 = vld [vmem:[%s5] sm:$0x1]
        %v1188 = vlaneseq
        %v1189 = vshrl.u32 %v1188, 7
        %v1190 = vsub.s32 0, %v1189
        %v1191 = vrot.slane %v1186, %v1190
        %v1197 = vunpack.c.l.b16 %v1182
        %v1198 = vunpack.c.l.b16 %v1183
        %v1199 = vunpack.c.l.b16 %v1184
        %v1200 = vunpack.c.l.b16 %v1185
        %v1201 = vpack.c.b16 %v1198, %v1197
        %v1202 = vpack.c.b16 %v1200, %v1199
        %vm1203 = vcmask 261120
        %v1205 = vsel %vm1203, %v1181, 0
        %v1208 = vsel %vm1203, %v1201, 0
        %v1211 = vsel %vm1203, %v1202, 0
        %1213 = vmatprep.subr.bf16.mxu0 0
        %1214 = vmatpush1.bf16.xpose.msra.mxu0 %v1208
        %1215 = vmatprep.subr.bf16.mxu0 0
        %1216 = vmatpush1.bf16.xpose.msra.mxu0 %v1211
        %1217 = vmatprep.subr.bf16.mxu0 0
        %1218 = vmatpush1.bf16.xpose.msra.mxu0 0
        %1219 = vmatprep.subr.bf16.mxu0 0
        %1220 = vmatpush1.bf16.xpose.msra.mxu0 0
        %1221 = vmatprep.subr.bf16.mxu0 0
        %1222 = vmatpush1.bf16.xpose.msra.mxu0 0
        %1223 = vmatprep.subr.bf16.mxu0 0
        %1224 = vmatpush1.bf16.xpose.msra.mxu0 0
        %1225 = vmatprep.subr.bf16.mxu0 0
        %1226 = vmatpush1.bf16.xpose.msra.mxu0 0
        %1227 = vmatprep.subr.bf16.mxu0 0
        %1228 = vmatpush1.bf16.xpose.msra.mxu0 0
        %1229 = vmatprep.subr.bf16.mxu0 0
        %1230 = vmatpush1.bf16.xpose.msra.mxu0 0
        %1231 = vmatprep.subr.bf16.mxu0 0
        %1232 = vmatpush1.bf16.xpose.msra.mxu0 0
        %1233 = vmatprep.subr.bf16.mxu0 0
        %1234 = vmatpush1.bf16.xpose.msra.mxu0 0
        %1235 = vmatprep.subr.bf16.mxu0 0
        %1236 = vmatpush1.bf16.xpose.msra.mxu0 0
        %1237 = vmatprep.subr.bf16.mxu0 0
        %1238 = vmatpush1.bf16.xpose.msra.mxu0 0
        %1239 = vmatprep.subr.bf16.mxu0 0
        %1240 = vmatpush1.bf16.xpose.msra.mxu0 0
        %1241 = vmatprep.subr.bf16.mxu0 0
        %1242 = vmatpush1.bf16.xpose.msra.mxu0 0
        %1243 = vmatprep.subr.bf16.mxu0 0
        %1244 = vmatpush1.bf16.xpose.msra.mxu0 0
        %1245 = vmatprep.mubr.bf16.mxu0 0
        %1246 = vmatmul.mubr.bf16.gmra.mrb[0].mxu0 %v1205
        %v1247 = vpop.f32.mrb[0].mxu0
        %v1248 = vadd.f32 %v1191, %v1247
        %v1249 = vpop.f32.mrb[0].mxu0
        %v1250 = vpop.f32.mrb[0].mxu0
        %v1251 = vpop.f32.mrb[0].mxu0
        %1252 = vdwg.mxu0
        %v1253 = vmul.f32 %v1248, 0.35355338
        %1255 = vrot.lane.b32.xlu0 %v1253, 120
        %v1256 = vpop.permute.xlu0 %1255
        %1258 = vrot.lane.b32.xlu0 %v1253, 112
        %v1259 = vpop.permute.xlu0 %1258
        %1261 = vrot.lane.b32.xlu0 %v1253, 104
        %v1262 = vpop.permute.xlu0 %1261
        %v1264 = vcombine.low %v1253, %v1259
        %v1265 = vcombine.high %v1253, %v1259
        %v1267 = vunpack.c.l.s4 1983009808
        %v1268 = vunpack.c.0.s8 %v1267
        %v1269 = vlaneseq
        %v1270 = vshrl.u32 %v1269, 7
        %v1271 = vsub.s32 %v1268, %v1270
        %v1272 = vrot.slane %v1264, %v1271
        %v1274 = vunpack.c.l.s4 1983009808
        %v1275 = vunpack.c.0.s8 %v1274
        %v1276 = vlaneseq
        %v1277 = vshrl.u32 %v1276, 7
        %v1278 = vsub.s32 %v1275, %v1277
        %v1279 = vrot.slane %v1265, %v1278
        %v1280 = vcombine.low %v1256, %v1262
        %v1281 = vcombine.high %v1256, %v1262
        %v1283 = vunpack.c.l.s4 1983009808
        %v1284 = vunpack.c.0.s8 %v1283
        %v1285 = vlaneseq
        %v1286 = vshrl.u32 %v1285, 7
        %v1287 = vsub.s32 %v1284, %v1286
        %v1288 = vrot.slane %v1280, %v1287
        %v1290 = vunpack.c.l.s4 1983009808
        %v1291 = vunpack.c.0.s8 %v1290
        %v1292 = vlaneseq
        %v1293 = vshrl.u32 %v1292, 7
        %v1294 = vsub.s32 %v1291, %v1293
        %v1295 = vrot.slane %v1281, %v1294
        %v1296 = vcombine.low %v1272, %v1288
        %v1297 = vcombine.high %v1272, %v1288
        %v1299 = vunpack.c.l.s4 1934713408
        %v1300 = vunpack.c.0.s8 %v1299
        %v1301 = vlaneseq
        %v1302 = vshrl.u32 %v1301, 7
        %v1303 = vsub.s32 %v1300, %v1302
        %v1304 = vrot.slane %v1296, %v1303
        %v1306 = vunpack.c.l.s4 1934713408
        %v1307 = vunpack.c.0.s8 %v1306
        %v1308 = vlaneseq
        %v1309 = vshrl.u32 %v1308, 7
        %v1310 = vsub.s32 %v1307, %v1309
        %v1311 = vrot.slane %v1297, %v1310
        %v1312 = vcombine.low %v1279, %v1295
        %v1313 = vcombine.high %v1279, %v1295
        %v1315 = vunpack.c.l.s4 1934713408
        %v1316 = vunpack.c.0.s8 %v1315
        %v1317 = vlaneseq
        %v1318 = vshrl.u32 %v1317, 7
        %v1319 = vsub.s32 %v1316, %v1318
        %v1320 = vrot.slane %v1312, %v1319
        %v1322 = vunpack.c.l.s4 1934713408
        %v1323 = vunpack.c.0.s8 %v1322
        %v1324 = vlaneseq
        %v1325 = vshrl.u32 %v1324, 7
        %v1326 = vsub.s32 %v1323, %v1325
        %v1327 = vrot.slane %v1313, %v1326
        %v1328 = vcombine.high %v1304, 0.0
        %v1329 = vcombine.high %v1311, 0.0
        %v1330 = vcombine.high %v1320, 0.0
        %v1331 = vcombine.high %v1327, 0.0
        %v1332 = vcombine.low %v1304, %v1311
        %v1334 = vunpack.c.l.s4 1983009808
        %v1335 = vunpack.c.0.s8 %v1334
        %v1336 = vlaneseq
        %v1337 = vshrl.u32 %v1336, 7
        %v1338 = vsub.s32 %v1335, %v1337
        %v1339 = vrot.slane %v1332, %v1338
        %v1340 = vcombine.low %v1328, %v1329
        %v1342 = vunpack.c.l.s4 1983009808
        %v1343 = vunpack.c.0.s8 %v1342
        %v1344 = vlaneseq
        %v1345 = vshrl.u32 %v1344, 7
        %v1346 = vsub.s32 %v1343, %v1345
        %v1347 = vrot.slane %v1340, %v1346
        %v1348 = vcombine.low %v1320, %v1327
        %v1350 = vunpack.c.l.s4 1983009808
        %v1351 = vunpack.c.0.s8 %v1350
        %v1352 = vlaneseq
        %v1353 = vshrl.u32 %v1352, 7
        %v1354 = vsub.s32 %v1351, %v1353
        %v1355 = vrot.slane %v1348, %v1354
        %v1356 = vcombine.low %v1330, %v1331
        %v1358 = vunpack.c.l.s4 1983009808
        %v1359 = vunpack.c.0.s8 %v1358
        %v1360 = vlaneseq
        %v1361 = vshrl.u32 %v1360, 7
        %v1362 = vsub.s32 %v1359, %v1361
        %v1363 = vrot.slane %v1356, %v1362
        %v1364 = vcombine.low %v1339, %v1347
        %v1365 = vcombine.high %v1339, %v1347
        %v1367 = vunpack.c.l.s4 1934713408
        %v1368 = vunpack.c.0.s8 %v1367
        %v1369 = vlaneseq
        %v1370 = vshrl.u32 %v1369, 7
        %v1371 = vsub.s32 %v1368, %v1370
        %v1372 = vrot.slane %v1364, %v1371
        %v1374 = vunpack.c.l.s4 1934713408
        %v1375 = vunpack.c.0.s8 %v1374
        %v1376 = vlaneseq
        %v1377 = vshrl.u32 %v1376, 7
        %v1378 = vsub.s32 %v1375, %v1377
        %v1379 = vrot.slane %v1365, %v1378
        %v1380 = vcombine.low %v1355, %v1363
        %v1381 = vcombine.high %v1355, %v1363
        %v1383 = vunpack.c.l.s4 1934713408
        %v1384 = vunpack.c.0.s8 %v1383
        %v1385 = vlaneseq
        %v1386 = vshrl.u32 %v1385, 7
        %v1387 = vsub.s32 %v1384, %v1386
        %v1388 = vrot.slane %v1380, %v1387
        %v1390 = vunpack.c.l.s4 1934713408
        %v1391 = vunpack.c.0.s8 %v1390
        %v1392 = vlaneseq
        %v1393 = vshrl.u32 %v1392, 7
        %v1394 = vsub.s32 %v1391, %v1393
        %v1395 = vrot.slane %v1381, %v1394
        %v1396 = vcombine.low %v1372, %v1388
        %v1397 = vcombine.high %v1372, %v1388
        %v1398 = vcombine.low %v1379, %v1395
        %v1399 = vcombine.high %v1379, %v1395
        %v1400 = vpack.c.bf16 %v1396, %v1396
        %v1401 = vpack.c.bf16 %v1397, %v1397
        %v1402 = vpack.c.bf16 %v1398, %v1398
        %v1403 = vpack.c.bf16 %v1399, %v1399
        %v1404 = vld [vmem:[#allocation2] sm:$0xff]
        %v1405 = vld [vmem:[#allocation2 + $0x8] sm:$0xff]
        %v1406 = vld [vmem:[#allocation2 + $0x10] sm:$0xff]
        %v1407 = vld [vmem:[#allocation2 + $0x18] sm:$0xff]
        %vm1408 = vcmask 64512
        %v1410 = vsel %vm1408, %v1400, 0
        %v1413 = vsel %vm1408, %v1404, 0
        %1415 = vmatprep.subr.bf16.mxu0 0
        %1416 = vmatpush1.bf16.xpose.msra.mxu0 %v1413
        %1417 = vmatprep.subr.bf16.mxu0 0
        %1418 = vmatpush1.bf16.xpose.msra.mxu0 0
        %1419 = vmatprep.subr.bf16.mxu0 0
        %1420 = vmatpush1.bf16.xpose.msra.mxu0 0
        %1421 = vmatprep.subr.bf16.mxu0 0
        %1422 = vmatpush1.bf16.xpose.msra.mxu0 0
        %1423 = vmatprep.subr.bf16.mxu0 0
        %1424 = vmatpush1.bf16.xpose.msra.mxu0 0
        %1425 = vmatprep.subr.bf16.mxu0 0
        %1426 = vmatpush1.bf16.xpose.msra.mxu0 0
        %1427 = vmatprep.subr.bf16.mxu0 0
        %1428 = vmatpush1.bf16.xpose.msra.mxu0 0
        %1429 = vmatprep.subr.bf16.mxu0 0
        %1430 = vmatpush1.bf16.xpose.msra.mxu0 0
        %1431 = vmatprep.subr.bf16.mxu0 0
        %1432 = vmatpush1.bf16.xpose.msra.mxu0 0
        %1433 = vmatprep.subr.bf16.mxu0 0
        %1434 = vmatpush1.bf16.xpose.msra.mxu0 0
        %1435 = vmatprep.subr.bf16.mxu0 0
        %1436 = vmatpush1.bf16.xpose.msra.mxu0 0
        %1437 = vmatprep.subr.bf16.mxu0 0
        %1438 = vmatpush1.bf16.xpose.msra.mxu0 0
        %1439 = vmatprep.subr.bf16.mxu0 0
        %1440 = vmatpush1.bf16.xpose.msra.mxu0 0
        %1441 = vmatprep.subr.bf16.mxu0 0
        %1442 = vmatpush1.bf16.xpose.msra.mxu0 0
        %1443 = vmatprep.subr.bf16.mxu0 0
        %1444 = vmatpush1.bf16.xpose.msra.mxu0 0
        %1445 = vmatprep.subr.bf16.mxu0 0
        %1446 = vmatpush1.bf16.xpose.msra.mxu0 0
        %1447 = vmatprep.mubr.bf16.mxu0 0
        %1448 = vmatmul.mubr.bf16.gmra.mrb[0].mxu0 %v1410
        %v1449 = vpop.f32.mrb[0].mxu0
        %v1450 = vadd.f32 0.0, %v1449
        %v1451 = vpop.f32.mrb[0].mxu0
        %v1452 = vpop.f32.mrb[0].mxu0
        %v1453 = vpop.f32.mrb[0].mxu0
        %1454 = vdwg.mxu0
        %v1456 = vsel %vm1408, %v1401, 0
        %v1459 = vsel %vm1408, %v1405, 0
        %1461 = vmatprep.subr.bf16.mxu0 0
        %1462 = vmatpush1.bf16.xpose.msra.mxu0 %v1459
        %1463 = vmatprep.subr.bf16.mxu0 0
        %1464 = vmatpush1.bf16.xpose.msra.mxu0 0
        %1465 = vmatprep.subr.bf16.mxu0 0
        %1466 = vmatpush1.bf16.xpose.msra.mxu0 0
        %1467 = vmatprep.subr.bf16.mxu0 0
        %1468 = vmatpush1.bf16.xpose.msra.mxu0 0
        %1469 = vmatprep.subr.bf16.mxu0 0
        %1470 = vmatpush1.bf16.xpose.msra.mxu0 0
        %1471 = vmatprep.subr.bf16.mxu0 0
        %1472 = vmatpush1.bf16.xpose.msra.mxu0 0
        %1473 = vmatprep.subr.bf16.mxu0 0
        %1474 = vmatpush1.bf16.xpose.msra.mxu0 0
        %1475 = vmatprep.subr.bf16.mxu0 0
        %1476 = vmatpush1.bf16.xpose.msra.mxu0 0
        %1477 = vmatprep.subr.bf16.mxu0 0
        %1478 = vmatpush1.bf16.xpose.msra.mxu0 0
        %1479 = vmatprep.subr.bf16.mxu0 0
        %1480 = vmatpush1.bf16.xpose.msra.mxu0 0
        %1481 = vmatprep.subr.bf16.mxu0 0
        %1482 = vmatpush1.bf16.xpose.msra.mxu0 0
        %1483 = vmatprep.subr.bf16.mxu0 0
        %1484 = vmatpush1.bf16.xpose.msra.mxu0 0
        %1485 = vmatprep.subr.bf16.mxu0 0
        %1486 = vmatpush1.bf16.xpose.msra.mxu0 0
        %1487 = vmatprep.subr.bf16.mxu0 0
        %1488 = vmatpush1.bf16.xpose.msra.mxu0 0
        %1489 = vmatprep.subr.bf16.mxu0 0
        %1490 = vmatpush1.bf16.xpose.msra.mxu0 0
        %1491 = vmatprep.subr.bf16.mxu0 0
        %1492 = vmatpush1.bf16.xpose.msra.mxu0 0
        %1493 = vmatprep.mubr.bf16.mxu0 0
        %1494 = vmatmul.mubr.bf16.gmra.mrb[0].mxu0 %v1456
        %v1495 = vpop.f32.mrb[0].mxu0
        %v1496 = vadd.f32 0.0, %v1495
        %v1497 = vpop.f32.mrb[0].mxu0
        %v1498 = vpop.f32.mrb[0].mxu0
        %v1499 = vpop.f32.mrb[0].mxu0
        %1500 = vdwg.mxu0
        %v1502 = vsel %vm1408, %v1402, 0
        %v1505 = vsel %vm1408, %v1406, 0
        %1507 = vmatprep.subr.bf16.mxu0 0
        %1508 = vmatpush1.bf16.xpose.msra.mxu0 %v1505
        %1509 = vmatprep.subr.bf16.mxu0 0
        %1510 = vmatpush1.bf16.xpose.msra.mxu0 0
        %1511 = vmatprep.subr.bf16.mxu0 0
        %1512 = vmatpush1.bf16.xpose.msra.mxu0 0
        %1513 = vmatprep.subr.bf16.mxu0 0
        %1514 = vmatpush1.bf16.xpose.msra.mxu0 0
        %1515 = vmatprep.subr.bf16.mxu0 0
        %1516 = vmatpush1.bf16.xpose.msra.mxu0 0
        %1517 = vmatprep.subr.bf16.mxu0 0
        %1518 = vmatpush1.bf16.xpose.msra.mxu0 0
        %1519 = vmatprep.subr.bf16.mxu0 0
        %1520 = vmatpush1.bf16.xpose.msra.mxu0 0
        %1521 = vmatprep.subr.bf16.mxu0 0
        %1522 = vmatpush1.bf16.xpose.msra.mxu0 0
        %1523 = vmatprep.subr.bf16.mxu0 0
        %1524 = vmatpush1.bf16.xpose.msra.mxu0 0
        %1525 = vmatprep.subr.bf16.mxu0 0
        %1526 = vmatpush1.bf16.xpose.msra.mxu0 0
        %1527 = vmatprep.subr.bf16.mxu0 0
        %1528 = vmatpush1.bf16.xpose.msra.mxu0 0
        %1529 = vmatprep.subr.bf16.mxu0 0
        %1530 = vmatpush1.bf16.xpose.msra.mxu0 0
        %1531 = vmatprep.subr.bf16.mxu0 0
        %1532 = vmatpush1.bf16.xpose.msra.mxu0 0
        %1533 = vmatprep.subr.bf16.mxu0 0
        %1534 = vmatpush1.bf16.xpose.msra.mxu0 0
        %1535 = vmatprep.subr.bf16.mxu0 0
        %1536 = vmatpush1.bf16.xpose.msra.mxu0 0
        %1537 = vmatprep.subr.bf16.mxu0 0
        %1538 = vmatpush1.bf16.xpose.msra.mxu0 0
        %1539 = vmatprep.mubr.bf16.mxu0 0
        %1540 = vmatmul.mubr.bf16.gmra.mrb[0].mxu0 %v1502
        %v1541 = vpop.f32.mrb[0].mxu0
        %v1542 = vadd.f32 0.0, %v1541
        %v1543 = vpop.f32.mrb[0].mxu0
        %v1544 = vpop.f32.mrb[0].mxu0
        %v1545 = vpop.f32.mrb[0].mxu0
        %1546 = vdwg.mxu0
        %v1548 = vsel %vm1408, %v1403, 0
        %v1551 = vsel %vm1408, %v1407, 0
        %1553 = vmatprep.subr.bf16.mxu0 0
        %1554 = vmatpush1.bf16.xpose.msra.mxu0 %v1551
        %1555 = vmatprep.subr.bf16.mxu0 0
        %1556 = vmatpush1.bf16.xpose.msra.mxu0 0
        %1557 = vmatprep.subr.bf16.mxu0 0
        %1558 = vmatpush1.bf16.xpose.msra.mxu0 0
        %1559 = vmatprep.subr.bf16.mxu0 0
        %1560 = vmatpush1.bf16.xpose.msra.mxu0 0
        %1561 = vmatprep.subr.bf16.mxu0 0
        %1562 = vmatpush1.bf16.xpose.msra.mxu0 0
        %1563 = vmatprep.subr.bf16.mxu0 0
        %1564 = vmatpush1.bf16.xpose.msra.mxu0 0
        %1565 = vmatprep.subr.bf16.mxu0 0
        %1566 = vmatpush1.bf16.xpose.msra.mxu0 0
        %1567 = vmatprep.subr.bf16.mxu0 0
        %1568 = vmatpush1.bf16.xpose.msra.mxu0 0
        %1569 = vmatprep.subr.bf16.mxu0 0
        %1570 = vmatpush1.bf16.xpose.msra.mxu0 0
        %1571 = vmatprep.subr.bf16.mxu0 0
        %1572 = vmatpush1.bf16.xpose.msra.mxu0 0
        %1573 = vmatprep.subr.bf16.mxu0 0
        %1574 = vmatpush1.bf16.xpose.msra.mxu0 0
        %1575 = vmatprep.subr.bf16.mxu0 0
        %1576 = vmatpush1.bf16.xpose.msra.mxu0 0
        %1577 = vmatprep.subr.bf16.mxu0 0
        %1578 = vmatpush1.bf16.xpose.msra.mxu0 0
        %1579 = vmatprep.subr.bf16.mxu0 0
        %1580 = vmatpush1.bf16.xpose.msra.mxu0 0
        %1581 = vmatprep.subr.bf16.mxu0 0
        %1582 = vmatpush1.bf16.xpose.msra.mxu0 0
        %1583 = vmatprep.subr.bf16.mxu0 0
        %1584 = vmatpush1.bf16.xpose.msra.mxu0 0
        %1585 = vmatprep.mubr.bf16.mxu0 0
        %1586 = vmatmul.mubr.bf16.gmra.mrb[0].mxu0 %v1548
        %v1587 = vpop.f32.mrb[0].mxu0
        %v1588 = vadd.f32 0.0, %v1587
        %v1589 = vpop.f32.mrb[0].mxu0
        %v1590 = vpop.f32.mrb[0].mxu0
        %v1591 = vpop.f32.mrb[0].mxu0
        %1592 = vdwg.mxu0
        %vm1593 = vcmask 130048
        %v1594 = vsel %vm1593, %v1450, -inf
        %1595 = vmax.xlane.f32.xlu0 %v1594
        %v1596 = vpop.xlane.xlu0 %1595
        %v1597 = vsel %vm1593, %v1496, -inf
        %1598 = vmax.xlane.f32.xlu0 %v1597
        %v1599 = vpop.xlane.xlu0 %1598
        %v1600 = vsel %vm1593, %v1542, -inf
        %1601 = vmax.xlane.f32.xlu0 %v1600
        %v1602 = vpop.xlane.xlu0 %1601
        %v1603 = vsel %vm1593, %v1588, -inf
        %1604 = vmax.xlane.f32.xlu0 %v1603
        %v1605 = vpop.xlane.xlu0 %1604
        %v1606 = vsub.f32 %v1450, %v1596
        %v1607 = vsub.f32 %v1496, %v1599
        %v1608 = vsub.f32 %v1542, %v1602
        %v1609 = vsub.f32 %v1588, %v1605
        %v1610 = vmul.f32 %v1606, 1.442695
        %v1611 = vpow.pop %v1610
        %v1612 = vmul.f32 %v1607, 1.442695
        %v1613 = vpow.pop %v1612
        %v1614 = vmul.f32 %v1608, 1.442695
        %v1615 = vpow.pop %v1614
        %v1616 = vmul.f32 %v1609, 1.442695
        %v1617 = vpow.pop %v1616
        %v1618 = vsel %vm1593, %v1611, 0.0
        %1619 = vadd.xlane.f32.xlu0 %v1618
        %v1620 = vpop.xlane.xlu0 %1619
        %v1621 = vsel %vm1593, %v1613, 0.0
        %1622 = vadd.xlane.f32.xlu0 %v1621
        %v1623 = vpop.xlane.xlu0 %1622
        %v1624 = vsel %vm1593, %v1615, 0.0
        %1625 = vadd.xlane.f32.xlu0 %v1624
        %v1626 = vpop.xlane.xlu0 %1625
        %v1627 = vsel %vm1593, %v1617, 0.0
        %1628 = vadd.xlane.f32.xlu0 %v1627
        %v1629 = vpop.xlane.xlu0 %1628
        %v1630 = vpack.c.bf16 %v1611, %v1611
        %v1631 = vpack.c.bf16 %v1613, %v1613
        %v1632 = vpack.c.bf16 %v1615, %v1615
        %v1633 = vpack.c.bf16 %v1617, %v1617
        %v1634 = vld [vmem:[#allocation3] sm:$0xff]
        %v1635 = vld [vmem:[#allocation3 + $0x8] sm:$0xff]
        %v1636 = vld [vmem:[#allocation3 + $0x10] sm:$0xff]
        %v1637 = vld [vmem:[#allocation3 + $0x18] sm:$0xff]
        %v1639 = vsel %vm1593, %v1630, 0
        %1641 = vmatprep.subr.bf16.mxu0 0
        %1642 = vmatpush1.bf16.msra.mxu0 %v1634
        %1643 = vmatprep.subr.bf16.mxu0 0
        %1644 = vmatpush1.bf16.msra.mxu0 0
        %1645 = vmatprep.subr.bf16.mxu0 0
        %1646 = vmatpush1.bf16.msra.mxu0 0
        %1647 = vmatprep.subr.bf16.mxu0 0
        %1648 = vmatpush1.bf16.msra.mxu0 0
        %1649 = vmatprep.subr.bf16.mxu0 0
        %1650 = vmatpush1.bf16.msra.mxu0 0
        %1651 = vmatprep.subr.bf16.mxu0 0
        %1652 = vmatpush1.bf16.msra.mxu0 0
        %1653 = vmatprep.subr.bf16.mxu0 0
        %1654 = vmatpush1.bf16.msra.mxu0 0
        %1655 = vmatprep.subr.bf16.mxu0 0
        %1656 = vmatpush1.bf16.msra.mxu0 0
        %1657 = vmatprep.subr.bf16.mxu0 0
        %1658 = vmatpush1.bf16.msra.mxu0 0
        %1659 = vmatprep.subr.bf16.mxu0 0
        %1660 = vmatpush1.bf16.msra.mxu0 0
        %1661 = vmatprep.subr.bf16.mxu0 0
        %1662 = vmatpush1.bf16.msra.mxu0 0
        %1663 = vmatprep.subr.bf16.mxu0 0
        %1664 = vmatpush1.bf16.msra.mxu0 0
        %1665 = vmatprep.subr.bf16.mxu0 0
        %1666 = vmatpush1.bf16.msra.mxu0 0
        %1667 = vmatprep.subr.bf16.mxu0 0
        %1668 = vmatpush1.bf16.msra.mxu0 0
        %1669 = vmatprep.subr.bf16.mxu0 0
        %1670 = vmatpush1.bf16.msra.mxu0 0
        %1671 = vmatprep.subr.bf16.mxu0 0
        %1672 = vmatpush1.bf16.msra.mxu0 0
        %1673 = vmatprep.mubr.bf16.mxu0 0
        %1674 = vmatmul.mubr.bf16.gmra.mrb[0].mxu0 %v1639
        %v1675 = vpop.f32.mrb[0].mxu0
        %v1676 = vadd.f32 0.0, %v1675
        %v1677 = vpop.f32.mrb[0].mxu0
        %v1678 = vpop.f32.mrb[0].mxu0
        %v1679 = vpop.f32.mrb[0].mxu0
        %1680 = vdwg.mxu0
        %v1682 = vsel %vm1593, %v1631, 0
        %1684 = vmatprep.subr.bf16.mxu0 0
        %1685 = vmatpush1.bf16.msra.mxu0 %v1635
        %1686 = vmatprep.subr.bf16.mxu0 0
        %1687 = vmatpush1.bf16.msra.mxu0 0
        %1688 = vmatprep.subr.bf16.mxu0 0
        %1689 = vmatpush1.bf16.msra.mxu0 0
        %1690 = vmatprep.subr.bf16.mxu0 0
        %1691 = vmatpush1.bf16.msra.mxu0 0
        %1692 = vmatprep.subr.bf16.mxu0 0
        %1693 = vmatpush1.bf16.msra.mxu0 0
        %1694 = vmatprep.subr.bf16.mxu0 0
        %1695 = vmatpush1.bf16.msra.mxu0 0
        %1696 = vmatprep.subr.bf16.mxu0 0
        %1697 = vmatpush1.bf16.msra.mxu0 0
        %1698 = vmatprep.subr.bf16.mxu0 0
        %1699 = vmatpush1.bf16.msra.mxu0 0
        %1700 = vmatprep.subr.bf16.mxu0 0
        %1701 = vmatpush1.bf16.msra.mxu0 0
        %1702 = vmatprep.subr.bf16.mxu0 0
        %1703 = vmatpush1.bf16.msra.mxu0 0
        %1704 = vmatprep.subr.bf16.mxu0 0
        %1705 = vmatpush1.bf16.msra.mxu0 0
        %1706 = vmatprep.subr.bf16.mxu0 0
        %1707 = vmatpush1.bf16.msra.mxu0 0
        %1708 = vmatprep.subr.bf16.mxu0 0
        %1709 = vmatpush1.bf16.msra.mxu0 0
        %1710 = vmatprep.subr.bf16.mxu0 0
        %1711 = vmatpush1.bf16.msra.mxu0 0
        %1712 = vmatprep.subr.bf16.mxu0 0
        %1713 = vmatpush1.bf16.msra.mxu0 0
        %1714 = vmatprep.subr.bf16.mxu0 0
        %1715 = vmatpush1.bf16.msra.mxu0 0
        %1716 = vmatprep.mubr.bf16.mxu0 0
        %1717 = vmatmul.mubr.bf16.gmra.mrb[0].mxu0 %v1682
        %v1718 = vpop.f32.mrb[0].mxu0
        %v1719 = vadd.f32 0.0, %v1718
        %v1720 = vpop.f32.mrb[0].mxu0
        %v1721 = vpop.f32.mrb[0].mxu0
        %v1722 = vpop.f32.mrb[0].mxu0
        %1723 = vdwg.mxu0
        %v1725 = vsel %vm1593, %v1632, 0
        %1727 = vmatprep.subr.bf16.mxu0 0
        %1728 = vmatpush1.bf16.msra.mxu0 %v1636
        %1729 = vmatprep.subr.bf16.mxu0 0
        %1730 = vmatpush1.bf16.msra.mxu0 0
        %1731 = vmatprep.subr.bf16.mxu0 0
        %1732 = vmatpush1.bf16.msra.mxu0 0
        %1733 = vmatprep.subr.bf16.mxu0 0
        %1734 = vmatpush1.bf16.msra.mxu0 0
        %1735 = vmatprep.subr.bf16.mxu0 0
        %1736 = vmatpush1.bf16.msra.mxu0 0
        %1737 = vmatprep.subr.bf16.mxu0 0
        %1738 = vmatpush1.bf16.msra.mxu0 0
        %1739 = vmatprep.subr.bf16.mxu0 0
        %1740 = vmatpush1.bf16.msra.mxu0 0
        %1741 = vmatprep.subr.bf16.mxu0 0
        %1742 = vmatpush1.bf16.msra.mxu0 0
        %1743 = vmatprep.subr.bf16.mxu0 0
        %1744 = vmatpush1.bf16.msra.mxu0 0
        %1745 = vmatprep.subr.bf16.mxu0 0
        %1746 = vmatpush1.bf16.msra.mxu0 0
        %1747 = vmatprep.subr.bf16.mxu0 0
        %1748 = vmatpush1.bf16.msra.mxu0 0
        %1749 = vmatprep.subr.bf16.mxu0 0
        %1750 = vmatpush1.bf16.msra.mxu0 0
        %1751 = vmatprep.subr.bf16.mxu0 0
        %1752 = vmatpush1.bf16.msra.mxu0 0
        %1753 = vmatprep.subr.bf16.mxu0 0
        %1754 = vmatpush1.bf16.msra.mxu0 0
        %1755 = vmatprep.subr.bf16.mxu0 0
        %1756 = vmatpush1.bf16.msra.mxu0 0
        %1757 = vmatprep.subr.bf16.mxu0 0
        %1758 = vmatpush1.bf16.msra.mxu0 0
        %1759 = vmatprep.mubr.bf16.mxu0 0
        %1760 = vmatmul.mubr.bf16.gmra.mrb[0].mxu0 %v1725
        %v1761 = vpop.f32.mrb[0].mxu0
        %v1762 = vadd.f32 0.0, %v1761
        %v1763 = vpop.f32.mrb[0].mxu0
        %v1764 = vpop.f32.mrb[0].mxu0
        %v1765 = vpop.f32.mrb[0].mxu0
        %1766 = vdwg.mxu0
        %v1768 = vsel %vm1593, %v1633, 0
        %1770 = vmatprep.subr.bf16.mxu0 0
        %1771 = vmatpush1.bf16.msra.mxu0 %v1637
        %1772 = vmatprep.subr.bf16.mxu0 0
        %1773 = vmatpush1.bf16.msra.mxu0 0
        %1774 = vmatprep.subr.bf16.mxu0 0
        %1775 = vmatpush1.bf16.msra.mxu0 0
        %1776 = vmatprep.subr.bf16.mxu0 0
        %1777 = vmatpush1.bf16.msra.mxu0 0
        %1778 = vmatprep.subr.bf16.mxu0 0
        %1779 = vmatpush1.bf16.msra.mxu0 0
        %1780 = vmatprep.subr.bf16.mxu0 0
        %1781 = vmatpush1.bf16.msra.mxu0 0
        %1782 = vmatprep.subr.bf16.mxu0 0
        %1783 = vmatpush1.bf16.msra.mxu0 0
        %1784 = vmatprep.subr.bf16.mxu0 0
        %1785 = vmatpush1.bf16.msra.mxu0 0
        %1786 = vmatprep.subr.bf16.mxu0 0
        %1787 = vmatpush1.bf16.msra.mxu0 0
        %1788 = vmatprep.subr.bf16.mxu0 0
        %1789 = vmatpush1.bf16.msra.mxu0 0
        %1790 = vmatprep.subr.bf16.mxu0 0
        %1791 = vmatpush1.bf16.msra.mxu0 0
        %1792 = vmatprep.subr.bf16.mxu0 0
        %1793 = vmatpush1.bf16.msra.mxu0 0
        %1794 = vmatprep.subr.bf16.mxu0 0
        %1795 = vmatpush1.bf16.msra.mxu0 0
        %1796 = vmatprep.subr.bf16.mxu0 0
        %1797 = vmatpush1.bf16.msra.mxu0 0
        %1798 = vmatprep.subr.bf16.mxu0 0
        %1799 = vmatpush1.bf16.msra.mxu0 0
        %1800 = vmatprep.subr.bf16.mxu0 0
        %1801 = vmatpush1.bf16.msra.mxu0 0
        %1802 = vmatprep.mubr.bf16.mxu0 0
        %1803 = vmatmul.mubr.bf16.gmra.mrb[0].mxu0 %v1768
        %v1804 = vpop.f32.mrb[0].mxu0
        %v1805 = vadd.f32 0.0, %v1804
        %v1806 = vpop.f32.mrb[0].mxu0
        %v1807 = vpop.f32.mrb[0].mxu0
        %v1808 = vpop.f32.mrb[0].mxu0
        %1809 = vdwg.mxu0
        %v1810 = vrcp.pop %v1620
        %v1811 = vrcp.pop %v1623
        %v1812 = vrcp.pop %v1626
        %v1813 = vrcp.pop %v1629
        %v1814 = vmul.f32 %v1676, %v1810
        %v1815 = vmul.f32 %v1719, %v1811
        %v1816 = vmul.f32 %v1762, %v1812
        %v1817 = vmul.f32 %v1805, %v1813
        %v1818 = vcombine.low %v1814, %v1816
        %v1819 = vcombine.high %v1814, %v1816
        %v1821 = vunpack.c.l.s4 1983009808
        %v1822 = vunpack.c.0.s8 %v1821
        %v1823 = vlaneseq
        %v1824 = vshrl.u32 %v1823, 7
        %v1825 = vsub.s32 %v1822, %v1824
        %v1826 = vrot.slane %v1818, %v1825
        %v1828 = vunpack.c.l.s4 1983009808
        %v1829 = vunpack.c.0.s8 %v1828
        %v1830 = vlaneseq
        %v1831 = vshrl.u32 %v1830, 7
        %v1832 = vsub.s32 %v1829, %v1831
        %v1833 = vrot.slane %v1819, %v1832
        %v1834 = vcombine.low %v1815, %v1817
        %v1835 = vcombine.high %v1815, %v1817
        %v1837 = vunpack.c.l.s4 1983009808
        %v1838 = vunpack.c.0.s8 %v1837
        %v1839 = vlaneseq
        %v1840 = vshrl.u32 %v1839, 7
        %v1841 = vsub.s32 %v1838, %v1840
        %v1842 = vrot.slane %v1834, %v1841
        %v1844 = vunpack.c.l.s4 1983009808
        %v1845 = vunpack.c.0.s8 %v1844
        %v1846 = vlaneseq
        %v1847 = vshrl.u32 %v1846, 7
        %v1848 = vsub.s32 %v1845, %v1847
        %v1849 = vrot.slane %v1835, %v1848
        %v1850 = vcombine.low %v1826, %v1842
        %v1851 = vcombine.high %v1826, %v1842
        %v1853 = vunpack.c.l.s4 1934713408
        %v1854 = vunpack.c.0.s8 %v1853
        %v1855 = vlaneseq
        %v1856 = vshrl.u32 %v1855, 7
        %v1857 = vsub.s32 %v1854, %v1856
        %v1858 = vrot.slane %v1850, %v1857
        %v1860 = vunpack.c.l.s4 1934713408
        %v1861 = vunpack.c.0.s8 %v1860
        %v1862 = vlaneseq
        %v1863 = vshrl.u32 %v1862, 7
        %v1864 = vsub.s32 %v1861, %v1863
        %v1865 = vrot.slane %v1851, %v1864
        %v1866 = vcombine.low %v1833, %v1849
        %v1867 = vcombine.high %v1833, %v1849
        %v1869 = vunpack.c.l.s4 1934713408
        %v1870 = vunpack.c.0.s8 %v1869
        %v1871 = vlaneseq
        %v1872 = vshrl.u32 %v1871, 7
        %v1873 = vsub.s32 %v1870, %v1872
        %v1874 = vrot.slane %v1866, %v1873
        %v1876 = vunpack.c.l.s4 1934713408
        %v1877 = vunpack.c.0.s8 %v1876
        %v1878 = vlaneseq
        %v1879 = vshrl.u32 %v1878, 7
        %v1880 = vsub.s32 %v1877, %v1879
        %v1881 = vrot.slane %v1867, %v1880
        %v1882 = vcombine.high %v1858, 0.0
        %v1883 = vcombine.high %v1865, 0.0
        %v1884 = vcombine.high %v1874, 0.0
        %v1885 = vcombine.high %v1881, 0.0
        %v1886 = vcombine.low %v1858, %v1865
        %v1888 = vunpack.c.l.s4 1983009808
        %v1889 = vunpack.c.0.s8 %v1888
        %v1890 = vlaneseq
        %v1891 = vshrl.u32 %v1890, 7
        %v1892 = vsub.s32 %v1889, %v1891
        %v1893 = vrot.slane %v1886, %v1892
        %v1894 = vcombine.low %v1882, %v1883
        %v1896 = vunpack.c.l.s4 1983009808
        %v1897 = vunpack.c.0.s8 %v1896
        %v1898 = vlaneseq
        %v1899 = vshrl.u32 %v1898, 7
        %v1900 = vsub.s32 %v1897, %v1899
        %v1901 = vrot.slane %v1894, %v1900
        %v1902 = vcombine.low %v1874, %v1881
        %v1904 = vunpack.c.l.s4 1983009808
        %v1905 = vunpack.c.0.s8 %v1904
        %v1906 = vlaneseq
        %v1907 = vshrl.u32 %v1906, 7
        %v1908 = vsub.s32 %v1905, %v1907
        %v1909 = vrot.slane %v1902, %v1908
        %v1910 = vcombine.low %v1884, %v1885
        %v1912 = vunpack.c.l.s4 1983009808
        %v1913 = vunpack.c.0.s8 %v1912
        %v1914 = vlaneseq
        %v1915 = vshrl.u32 %v1914, 7
        %v1916 = vsub.s32 %v1913, %v1915
        %v1917 = vrot.slane %v1910, %v1916
        %v1918 = vcombine.low %v1893, %v1901
        %v1919 = vcombine.high %v1893, %v1901
        %v1921 = vunpack.c.l.s4 1934713408
        %v1922 = vunpack.c.0.s8 %v1921
        %v1923 = vlaneseq
        %v1924 = vshrl.u32 %v1923, 7
        %v1925 = vsub.s32 %v1922, %v1924
        %v1926 = vrot.slane %v1918, %v1925
        %v1928 = vunpack.c.l.s4 1934713408
        %v1929 = vunpack.c.0.s8 %v1928
        %v1930 = vlaneseq
        %v1931 = vshrl.u32 %v1930, 7
        %v1932 = vsub.s32 %v1929, %v1931
        %v1933 = vrot.slane %v1919, %v1932
        %v1934 = vcombine.low %v1909, %v1917
        %v1935 = vcombine.high %v1909, %v1917
        %v1937 = vunpack.c.l.s4 1934713408
        %v1938 = vunpack.c.0.s8 %v1937
        %v1939 = vlaneseq
        %v1940 = vshrl.u32 %v1939, 7
        %v1941 = vsub.s32 %v1938, %v1940
        %v1942 = vrot.slane %v1934, %v1941
        %v1944 = vunpack.c.l.s4 1934713408
        %v1945 = vunpack.c.0.s8 %v1944
        %v1946 = vlaneseq
        %v1947 = vshrl.u32 %v1946, 7
        %v1948 = vsub.s32 %v1945, %v1947
        %v1949 = vrot.slane %v1935, %v1948
        %v1950 = vcombine.low %v1926, %v1942
        %v1951 = vcombine.high %v1926, %v1942
        %v1952 = vcombine.low %v1933, %v1949
        %v1953 = vcombine.high %v1933, %v1949
        %1955 = vrot.lane.b32.xlu0 %v1951, 8
        %v1956 = vpop.permute.xlu0 %1955
        %1959 = vrot.lane.b32.xlu0 %v1952, 16
        %v1960 = vpop.permute.xlu0 %1959
        %1963 = vrot.lane.b32.xlu0 %v1953, 24
        %v1964 = vpop.permute.xlu0 %1963
        %v1966 = vsel %vm1408, %v1950, %v1956
        %v1967 = vsel %vm1593, %v1966, %v1960
        %vm1968 = vcmask 195584
        %v1969 = vsel %vm1968, %v1967, %v1964
        %v1970 = vpack.c.bf16 %v1969, %v1969
        %v1971 = vld [vmem:[#allocation12] sm:$0xf]
        %v1972 = vld [vmem:[#allocation12 + $0x4] sm:$0xf]
        %v1973 = vld [vmem:[#allocation12 + $0x8] sm:$0xf]
        %v1974 = vld [vmem:[#allocation12 + $0xc] sm:$0xf]
        %v1975 = vld [vmem:[%s8] sm:$0x1]
        %v1977 = vlaneseq
        %v1978 = vshrl.u32 %v1977, 7
        %v1979 = vsub.s32 0, %v1978
        %v1980 = vrot.slane %v1975, %v1979
        %v1986 = vunpack.c.l.b16 %v1971
        %v1987 = vunpack.c.l.b16 %v1972
        %v1988 = vunpack.c.l.b16 %v1973
        %v1989 = vunpack.c.l.b16 %v1974
        %v1990 = vpack.c.b16 %v1987, %v1986
        %v1991 = vpack.c.b16 %v1989, %v1988
        %v1993 = vsel %vm1203, %v1970, 0
        %v1996 = vsel %vm1203, %v1990, 0
        %v1999 = vsel %vm1203, %v1991, 0
        %2001 = vmatprep.subr.bf16.mxu0 0
        %2002 = vmatpush1.bf16.xpose.msra.mxu0 %v1996
        %2003 = vmatprep.subr.bf16.mxu0 0
        %2004 = vmatpush1.bf16.xpose.msra.mxu0 %v1999
        %2005 = vmatprep.subr.bf16.mxu0 0
        %2006 = vmatpush1.bf16.xpose.msra.mxu0 0
        %2007 = vmatprep.subr.bf16.mxu0 0
        %2008 = vmatpush1.bf16.xpose.msra.mxu0 0
        %2009 = vmatprep.subr.bf16.mxu0 0
        %2010 = vmatpush1.bf16.xpose.msra.mxu0 0
        %2011 = vmatprep.subr.bf16.mxu0 0
        %2012 = vmatpush1.bf16.xpose.msra.mxu0 0
        %2013 = vmatprep.subr.bf16.mxu0 0
        %2014 = vmatpush1.bf16.xpose.msra.mxu0 0
        %2015 = vmatprep.subr.bf16.mxu0 0
        %2016 = vmatpush1.bf16.xpose.msra.mxu0 0
        %2017 = vmatprep.subr.bf16.mxu0 0
        %2018 = vmatpush1.bf16.xpose.msra.mxu0 0
        %2019 = vmatprep.subr.bf16.mxu0 0
        %2020 = vmatpush1.bf16.xpose.msra.mxu0 0
        %2021 = vmatprep.subr.bf16.mxu0 0
        %2022 = vmatpush1.bf16.xpose.msra.mxu0 0
        %2023 = vmatprep.subr.bf16.mxu0 0
        %2024 = vmatpush1.bf16.xpose.msra.mxu0 0
        %2025 = vmatprep.subr.bf16.mxu0 0
        %2026 = vmatpush1.bf16.xpose.msra.mxu0 0
        %2027 = vmatprep.subr.bf16.mxu0 0
        %2028 = vmatpush1.bf16.xpose.msra.mxu0 0
        %2029 = vmatprep.subr.bf16.mxu0 0
        %2030 = vmatpush1.bf16.xpose.msra.mxu0 0
        %2031 = vmatprep.subr.bf16.mxu0 0
        %2032 = vmatpush1.bf16.xpose.msra.mxu0 0
        %2033 = vmatprep.mubr.bf16.mxu0 0
        %2034 = vmatmul.mubr.bf16.gmra.mrb[0].mxu0 %v1993
        %v2035 = vpop.f32.mrb[0].mxu0
        %v2036 = vadd.f32 %v1980, %v2035
        %v2037 = vpop.f32.mrb[0].mxu0
        %v2038 = vpop.f32.mrb[0].mxu0
        %v2039 = vpop.f32.mrb[0].mxu0
        %2040 = vdwg.mxu0
        %2041 = vst.msk [vmem:[%s422] sm:$0xff] %vm1203, %v2036
        %s2042 = sand.u32 %s244, 1
        %s2043 = scalar_lea.sflag [#allocation6], %s2042
        %s2044 = sand.u32 %s244, 1
        %s2045 = smul.addr %s2044, 8
        %s2046 = scalar_lea.vmem [#allocation13], %s2045
        // Predicated region
        $region81: #{tpu_custom_call.1} parent=55 // pred_check
          %p2047 = pneg %p254
        $region82: #{tpu_custom_call.1} parent=55 // pred_check_branch
          %2049 = sbr.rel (%p2047) target = $region84
        $region83: #{tpu_custom_call.1} parent=55 // pred_region
          %s2051 = ssub.s32 128, 128
          %2052 = vsyncadd %s2043, %s2051
          %s2053 = smul.addr %s32, 2
          %s2054 = sadd.s32 %s33, %s2053
          %s2055 = smul.addr %s2054, 128
          %s2056 = scalar_lea.hbm %s9, %s2055
          %s2058 = sshll.u32 %s2046, 4
          %s2059 = int_to_ptr.vmem [resolvable:$true] %s2058
          %2061 = dma.vmem_to_hbm [thread:$0]  %s2059, 128, %s2056, %s2043
        $region84: #{tpu_custom_call.1} parent=55 // pred_fallthru
          _
      $region56: #{tpu_custom_call.1} parent=5 // pred_fallthru
        _
      %p2062 = scmp.le.s32.totalorder 2, %s23
      // Predicated region
      $region85: #{tpu_custom_call.1} parent=5 // pred_check
        %p2063 = pneg %p2062
      $region86: #{tpu_custom_call.1} parent=5 // pred_check_branch
        %2065 = sbr.rel (%p2063) target = $region88
      $region87: #{tpu_custom_call.1} parent=5 // pred_region
        %s2066 = ssub.s32 %s23, 2
        // Predicated region
        $region89: #{tpu_custom_call.1} parent=87 // pred_check
          %p2067 = pneg %p260
        $region90: #{tpu_custom_call.1} parent=87 // pred_check_branch
          %2069 = sbr.rel (%p2067) target = $region92
        $region91: #{tpu_custom_call.1} parent=87 // pred_region
          %s2070 = sand.u32 %s245, 1
          %s2071 = scalar_lea.sflag [#allocation6], %s2070
          %s2072 = sand.u32 %s245, 1
          %s2073 = smul.addr %s2072, 8
          %s2074 = scalar_lea.vmem [#allocation13], %s2073
          %2075 = dma.done %s2071, 128
        $region92: #{tpu_custom_call.1} parent=87 // pred_fallthru
          _
      $region88: #{tpu_custom_call.1} parent=5 // pred_fallthru
        _
    $region6: #{tpu_custom_call.1} parent=1 // loop_footer
      %s27 = sadd.s32 1, %s23
    $region7: #{tpu_custom_call.1} parent=1 // loop_footer_branch
      %22 = sbr.rel target = $region3
    $region8: #{tpu_custom_call.1} parent=1 // loop_exit
      _
    %2076 = vsyncpa [#allocation5], 1
    %s2077 = scalar_lea.sflag [#allocation5], 1
    %2078 = vsyncpa %s2077, 1
    %2079 = vsyncpa [#allocation8], 1
    %2080 = vsyncpa [#allocation11], 1
    %2081 = vsyncpa [#allocation6], 1
    %s2082 = scalar_lea.sflag [#allocation6], 1
    %2083 = vsyncpa %s2082, 1

</llo_original>
